<compile_context>
chip_gen: v7x
topology: tpu7x:2x2x1
jax: 0.10.0
libtpu: 0.0.40
codegen_flags: <defaults>
</compile_context>

<pallas_src>
import functools

import jax
import jax.numpy as jnp
from jax import lax
from jax.experimental import pallas as pl
from jax.experimental.pallas import tpu as pltpu


def _contrastive_loss_kernel(img_t_ref, cap_t_ref, img_full_ref, cap_full_ref,
                             out_ref, *, margin, hard_negative):
    i = pl.program_id(0)

    img_t = img_t_ref[...]            # (TM, D) native dtype (bf16 ok)
    cap_t = cap_t_ref[...]            # (TM, D)
    img_all = img_full_ref[...]       # (B, D)  resident
    cap_all = cap_full_ref[...]       # (B, D)  resident

    tm = img_t.shape[0]
    B = cap_all.shape[0]

    # Contract the last dim of both operands -> MXU directly, no transpose.
    dims = (((1,), (1,)), ((), ()))
    # scores_s[r, j]  = <img_{g}, cap_j>   with g = i*TM + r        (TM, B)
    scores_s = lax.dot_general(img_t, cap_all, dimension_numbers=dims,
                               preferred_element_type=jnp.float32)
    # scores_im[r, j] = <cap_{g}, img_j>  (= scores[j, g] of the full matrix)
    scores_im = lax.dot_general(cap_t, img_all, dimension_numbers=dims,
                                preferred_element_type=jnp.float32)

    # Diagonal entries of this tile: d_g = <img_g, cap_g>, computed rowwise in
    # f32 (matches MXU f32 accumulation of the scores).
    d = jnp.sum(img_t.astype(jnp.float32) * cap_t.astype(jnp.float32),
                axis=1, keepdims=True)                    # (TM, 1)
    thresh = d - jnp.float32(margin)                      # fused hinge threshold

    # Diagonal mask of the *full* matrix restricted to this tile's rows,
    # built from two cheap broadcast iotas (no (B,B) temporaries).
    row_g = lax.broadcasted_iota(jnp.int32, (tm, 1), 0) + i * tm
    col = lax.broadcasted_iota(jnp.int32, (1, B), 1)
    eye = row_g == col                                    # (TM, B) via broadcast

    # cost_s  rows = caption-retrieval hinge for image rows g
    # cost_im rows = image-retrieval hinge for caption columns g (role-swapped,
    #                so its reduction is row-local too)
    cost_s = jnp.where(eye, 0.0, jnp.maximum(scores_s - thresh, 0.0))
    cost_im = jnp.where(eye, 0.0, jnp.maximum(scores_im - thresh, 0.0))

    if hard_negative:
        part = (jnp.sum(jnp.max(cost_s, axis=1, keepdims=True))
                + jnp.sum(jnp.max(cost_im, axis=1, keepdims=True)))
    else:
        part = jnp.sum(cost_s) + jnp.sum(cost_im)

    @pl.when(i == 0)
    def _():
        out_ref[0, 0] = jnp.float32(0.0)

    out_ref[0, 0] += part


def _pick_row_tile(B):
    for tm in (256, 128, 64, 32, 16, 8):
        if B % tm == 0:
            return tm
    return B  # fallback: single full-batch tile (full-dim block is always legal)


def contrastive_loss(img_embeddings, caption_embeddings, *, margin=0.2,
                     hard_negative=True):
    B, D = img_embeddings.shape
    assert caption_embeddings.shape == (B, D)

    tm = _pick_row_tile(B)
    nt = B // tm

    kernel = functools.partial(
        _contrastive_loss_kernel,
        margin=float(margin),
        hard_negative=bool(hard_negative),
    )

    itemsize = jnp.dtype(img_embeddings.dtype).itemsize
    cost = pl.CostEstimate(
        flops=4 * B * B * D,               # two (B,B,D) matmuls, 2 flops/MAC
        transcendentals=0,
        bytes_accessed=4 * B * D * itemsize + 4,
    )

    out = pl.pallas_call(
        kernel,
        out_shape=jax.ShapeDtypeStruct((1, 1), jnp.float32),
        grid_spec=pltpu.PrefetchScalarGridSpec(
            num_scalar_prefetch=0,
            grid=(nt,),
            in_specs=[
                pl.BlockSpec((tm, D), lambda i: (i, 0)),   # img row tile (pipelined)
                pl.BlockSpec((tm, D), lambda i: (i, 0)),   # cap row tile (role-swap pass)
                pl.BlockSpec((B, D), lambda i: (0, 0)),    # img resident in VMEM
                pl.BlockSpec((B, D), lambda i: (0, 0)),    # cap resident in VMEM
            ],
            out_specs=pl.BlockSpec(memory_space=pltpu.MemorySpace.SMEM),
        ),
        compiler_params=pltpu.CompilerParams(
            dimension_semantics=("arbitrary",),            # scalar accumulator axis
            vmem_limit_bytes=64 * 1024 * 1024,
        ),
        cost_estimate=cost,
    )(img_embeddings, caption_embeddings, img_embeddings, caption_embeddings)
    return out[0, 0]


def _reference_loss(img, cap, margin=0.2, hard_negative=True):
    # pure-JAX reference mirroring the PyTorch module
    scores = img.astype(jnp.float32) @ cap.astype(jnp.float32).T
    diag = jnp.diag(scores).reshape(-1, 1)
    cost_s = jnp.maximum(margin + scores - diag, 0.0)
    cost_im = jnp.maximum(margin + scores - diag.T, 0.0)
    eye = jnp.eye(scores.shape[0], dtype=bool)
    cost_s = jnp.where(eye, 0.0, cost_s)
    cost_im = jnp.where(eye, 0.0, cost_im)
    if hard_negative:
        cost_s = cost_s.max(axis=1)
        cost_im = cost_im.max(axis=0)
    return cost_s.sum() + cost_im.sum()


if __name__ == "__main__":
    key = jax.random.PRNGKey(0)
    k1, k2 = jax.random.split(key)
    B, D = 256, 128
    img = jax.random.normal(k1, (B, D), dtype=jnp.float32)
    cap = jax.random.normal(k2, (B, D), dtype=jnp.float32)
    # L2-normalize like typical image/caption embeddings (scores in [-1, 1]).
    img = img / jnp.linalg.norm(img, axis=1, keepdims=True)
    cap = cap / jnp.linalg.norm(cap, axis=1, keepdims=True)

    for hard in (True, False):
        loss = contrastive_loss(img, cap, margin=0.2, hard_negative=hard)
        jax.block_until_ready(loss)
        ref = _reference_loss(img, cap, margin=0.2, hard_negative=hard)
        assert jnp.allclose(loss, ref, rtol=5e-3, atol=1e-2), (hard, loss, ref)

    print("KERNEL_OK")
</pallas_src>

<mosaic_0001>
module attributes {stable_mosaic.version = 11 : i64} {
  func.func @_contrastive_loss_kernel(%arg0: i32, %arg1: memref<256x128xf32, #tpu.memory_space<vmem>>, %arg2: memref<256x128xf32, #tpu.memory_space<vmem>>, %arg3: memref<256x128xf32, #tpu.memory_space<vmem>>, %arg4: memref<256x128xf32, #tpu.memory_space<vmem>>, %arg5: memref<1x1xf32, #tpu.memory_space<smem>>) attributes {dimension_semantics = [#tpu.dimension_semantics<arbitrary>], iteration_bounds = array<i64: 1>, scalar_prefetch = 0 : i64, scratch_operands = 0 : i64, tpu.core_type = #tpu.core_type<tc>, window_params = [{transform_indices = @transform_0, window_bounds = array<i64: 256, 128>}, {transform_indices = @transform_1, window_bounds = array<i64: 256, 128>}, {pipeline_mode = #tpu.pipeline_mode<synchronous>, transform_indices = @transform_2, window_bounds = array<i64: 256, 128>}, {pipeline_mode = #tpu.pipeline_mode<synchronous>, transform_indices = @transform_3, window_bounds = array<i64: 256, 128>}, {transform_indices = @transform_4, window_bounds = array<i64: 1, 1>}]} {
    %c0 = arith.constant 0 : index
    %c0_0 = arith.constant 0 : index
    %0 = vector.load %arg1[%c0, %c0_0] : memref<256x128xf32, #tpu.memory_space<vmem>>, vector<256x128xf32>
    %c0_1 = arith.constant 0 : index
    %c0_2 = arith.constant 0 : index
    %1 = vector.load %arg2[%c0_1, %c0_2] : memref<256x128xf32, #tpu.memory_space<vmem>>, vector<256x128xf32>
    %c0_3 = arith.constant 0 : index
    %c0_4 = arith.constant 0 : index
    %2 = vector.load %arg3[%c0_3, %c0_4] : memref<256x128xf32, #tpu.memory_space<vmem>>, vector<256x128xf32>
    %c0_5 = arith.constant 0 : index
    %c0_6 = arith.constant 0 : index
    %3 = vector.load %arg4[%c0_5, %c0_6] : memref<256x128xf32, #tpu.memory_space<vmem>>, vector<256x128xf32>
    %cst = arith.constant dense<0.000000e+00> : vector<256x256xf32>
    %4 = tpu.matmul %0, %3, %cst {dimension_numbers = #tpu.dot_dimension_numbers<[1], [1], [0], [0], [0, 0, 1, 0], [], []>} : vector<256x128xf32>, vector<256x128xf32>, vector<256x256xf32> -> vector<256x256xf32>
    %cst_7 = arith.constant dense<0.000000e+00> : vector<256x256xf32>
    %5 = tpu.matmul %1, %2, %cst_7 {dimension_numbers = #tpu.dot_dimension_numbers<[1], [1], [0], [0], [0, 0, 1, 0], [], []>} : vector<256x128xf32>, vector<256x128xf32>, vector<256x256xf32> -> vector<256x256xf32>
    %6 = arith.mulf %0, %1 : vector<256x128xf32>
    %cst_8 = arith.constant dense<0.000000e+00> : vector<256xf32>
    %7 = vector.multi_reduction <add>, %6, %cst_8 [1] : vector<256x128xf32> to vector<256xf32>
    %8 = vector.shape_cast %7 : vector<256xf32> to vector<256x1xf32>
    %cst_9 = arith.constant 2.000000e-01 : f32
    %9 = vector.broadcast %cst_9 : f32 to vector<256x1xf32>
    %10 = arith.subf %8, %9 : vector<256x1xf32>
    %11 = tpu.iota {dimensions = array<i32: 0>} : vector<256x1xi32>
    %c256_i32 = arith.constant 256 : i32
    %12 = arith.muli %arg0, %c256_i32 : i32
    %13 = vector.broadcast %12 : i32 to vector<256x1xi32>
    %14 = arith.addi %11, %13 : vector<256x1xi32>
    %15 = tpu.iota {dimensions = array<i32: 1>} : vector<1x256xi32>
    %16 = vector.broadcast %14 : vector<256x1xi32> to vector<256x256xi32>
    %17 = vector.broadcast %15 : vector<1x256xi32> to vector<256x256xi32>
    %18 = arith.cmpi eq, %16, %17 : vector<256x256xi32>
    %19 = vector.broadcast %10 : vector<256x1xf32> to vector<256x256xf32>
    %20 = arith.subf %4, %19 : vector<256x256xf32>
    %cst_10 = arith.constant 0.000000e+00 : f32
    %21 = vector.broadcast %cst_10 : f32 to vector<256x256xf32>
    %22 = arith.maximumf %20, %21 : vector<256x256xf32>
    %cst_11 = arith.constant 0.000000e+00 : f32
    %23 = vector.broadcast %cst_11 : f32 to vector<256x256xf32>
    %24 = arith.select %18, %23, %22 : vector<256x256xi1>, vector<256x256xf32>
    %25 = vector.broadcast %10 : vector<256x1xf32> to vector<256x256xf32>
    %26 = arith.subf %5, %25 : vector<256x256xf32>
    %cst_12 = arith.constant 0.000000e+00 : f32
    %27 = vector.broadcast %cst_12 : f32 to vector<256x256xf32>
    %28 = arith.maximumf %26, %27 : vector<256x256xf32>
    %cst_13 = arith.constant 0.000000e+00 : f32
    %29 = vector.broadcast %cst_13 : f32 to vector<256x256xf32>
    %30 = arith.select %18, %29, %28 : vector<256x256xi1>, vector<256x256xf32>
    %cst_14 = arith.constant dense<0xFF800000> : vector<256xf32>
    %31 = vector.multi_reduction <maximumf>, %24, %cst_14 [1] : vector<256x256xf32> to vector<256xf32>
    %32 = vector.shape_cast %31 : vector<256xf32> to vector<256x1xf32>
    %33 = vector.shape_cast %32 : vector<256x1xf32> to vector<1x256x1xf32>
    %cst_15 = arith.constant dense<0.000000e+00> : vector<1xf32>
    %34 = vector.multi_reduction <add>, %33, %cst_15 [1, 2] : vector<1x256x1xf32> to vector<1xf32>
    %35 = vector.shape_cast %34 : vector<1xf32> to vector<1x1x1xf32>
    %36 = vector.extract %35[0, 0, 0] : f32 from vector<1x1x1xf32>
    %cst_16 = arith.constant dense<0xFF800000> : vector<256xf32>
    %37 = vector.multi_reduction <maximumf>, %30, %cst_16 [1] : vector<256x256xf32> to vector<256xf32>
    %38 = vector.shape_cast %37 : vector<256xf32> to vector<256x1xf32>
    %39 = vector.shape_cast %38 : vector<256x1xf32> to vector<1x256x1xf32>
    %cst_17 = arith.constant dense<0.000000e+00> : vector<1xf32>
    %40 = vector.multi_reduction <add>, %39, %cst_17 [1, 2] : vector<1x256x1xf32> to vector<1xf32>
    %41 = vector.shape_cast %40 : vector<1xf32> to vector<1x1x1xf32>
    %42 = vector.extract %41[0, 0, 0] : f32 from vector<1x1x1xf32>
    %43 = arith.addf %36, %42 : f32
    %c0_i32 = arith.constant 0 : i32
    %44 = arith.cmpi eq, %arg0, %c0_i32 : i32
    %45 = arith.extui %44 : i1 to i32
    %c0_i32_18 = arith.constant 0 : i32
    %46 = arith.cmpi ne, %45, %c0_i32_18 : i32
    scf.if %46 {
      %cst_23 = arith.constant 0.000000e+00 : f32
      %c0_24 = arith.constant 0 : index
      %c0_25 = arith.constant 0 : index
      %50 = memref.load %arg5[%c0_24, %c0_25] : memref<1x1xf32, #tpu.memory_space<smem>>
      memref.store %cst_23, %arg5[%c0_24, %c0_25] : memref<1x1xf32, #tpu.memory_space<smem>>
    } else {
    }
    %c0_19 = arith.constant 0 : index
    %c0_20 = arith.constant 0 : index
    %47 = memref.load %arg5[%c0_19, %c0_20] : memref<1x1xf32, #tpu.memory_space<smem>>
    %48 = arith.addf %47, %43 : f32
    %c0_21 = arith.constant 0 : index
    %c0_22 = arith.constant 0 : index
    %49 = memref.load %arg5[%c0_21, %c0_22] : memref<1x1xf32, #tpu.memory_space<smem>>
    memref.store %48, %arg5[%c0_21, %c0_22] : memref<1x1xf32, #tpu.memory_space<smem>>
    return
  }
  func.func @transform_0(%arg0: i32) -> (i32, i32) {
    %c0_i32 = arith.constant 0 : i32
    %c0_i32_0 = arith.constant 0 : i32
    return %arg0, %c0_i32 : i32, i32
  }
  func.func @transform_1(%arg0: i32) -> (i32, i32) {
    %c0_i32 = arith.constant 0 : i32
    %c0_i32_0 = arith.constant 0 : i32
    return %arg0, %c0_i32 : i32, i32
  }
  func.func @transform_2(%arg0: i32) -> (i32, i32) {
    %c0_i32 = arith.constant 0 : i32
    %c0_i32_0 = arith.constant 0 : i32
    %c0_i32_1 = arith.constant 0 : i32
    return %c0_i32, %c0_i32_0 : i32, i32
  }
  func.func @transform_3(%arg0: i32) -> (i32, i32) {
    %c0_i32 = arith.constant 0 : i32
    %c0_i32_0 = arith.constant 0 : i32
    %c0_i32_1 = arith.constant 0 : i32
    return %c0_i32, %c0_i32_0 : i32, i32
  }
  func.func @transform_4(%arg0: i32) -> (i32, i32) {
    %c0_i32 = arith.constant 0 : i32
    %c0_i32_0 = arith.constant 0 : i32
    %c0_i32_1 = arith.constant 0 : i32
    return %c0_i32, %c0_i32_0 : i32, i32
  }
}

</mosaic_0001>

<llo_original>
// kernel: tpu_custom_call.1
$region0: #{tpu_custom_call.1}
  #allocation0 [shape = 'u32[]', space=smem, size = 0x4, offset = 0x4, fixed_abs, tag = 'smem constant byte address 0x4 - core index']
  #allocation1 [shape = 'u32[144,128]{1,0:T(1,128)}', space=vmem, size = 0x12000, scoped, tag = 'internal scratch']
  %s0 = inlined_call_operand.hbm [shape: f32[256,128], index: 0, kind: input, shape index: {}]
  %s1 = inlined_call_operand.hbm [shape: f32[256,128], index: 1, kind: input, shape index: {}]
  %s2 = inlined_call_operand.hbm [shape: f32[256,128], index: 2, kind: input, shape index: {}]
  %s3 = inlined_call_operand.hbm [shape: f32[256,128], index: 3, kind: input, shape index: {}]
  %s4 = inlined_call_operand.hbm [shape: f32[1,1], index: 4, kind: output, shape index: {}]
  %s5 = sld [smem:[#allocation0]]
  $region46: #{tpu_custom_call.1} parent=0
    _
  %s7 = ssub.s32 1, %s5
  %s8 = scalar_select 0, %s7, %s5
  $region1: #{tpu_custom_call.1} parent=0
    #allocation2 [shape = 'u8[131072]{0}', space=vmem, size = 0x20000, scoped, tag = 'input window, operand 0, single buffered']
    #allocation3 [shape = 's32[1]{0}', space=sflag, size = 0x4, scoped, tag = 'scoped memory for tpu_custom_call.1']
    #allocation4 [shape = 's32[1]{0}', space=sflag, size = 0x4, scoped, tag = 'scoped memory for tpu_custom_call.1']
    #allocation5 [shape = 'u8[131072]{0}', space=vmem, size = 0x20000, scoped, tag = 'input window, operand 1, single buffered']
    #allocation6 [shape = 's32[1]{0}', space=sflag, size = 0x4, scoped, tag = 'scoped memory for tpu_custom_call.1']
    #allocation7 [shape = 'u8[131072]{0}', space=vmem, size = 0x20000, scoped, tag = 'input window, operand 2, single buffered']
    #allocation8 [shape = 'u8[131072]{0}', space=vmem, size = 0x20000, scoped, tag = 'input window, operand 3, single buffered']
    #allocation9 [shape = 's32[1]{0}', space=sflag, size = 0x4, scoped, tag = 'scoped memory for tpu_custom_call.1']
    #allocation10 [shape = 'u8[512]{0}', space=smem, size = 0x200, scoped, tag = 'output window, operand 0, single buffered']
    %9 = vsyncpa [#allocation3], 0
    %10 = vsyncpa [#allocation6], 0
    %11 = vsyncpa [#allocation9], 0
    %12 = vsyncpa [#allocation4], 0
    // Predicated region
    $region2: #{tpu_custom_call.1} parent=1 // pred_check
      _
    $region3: #{tpu_custom_call.1} parent=1 // pred_check_branch
      %14 = sbr.rel (0) target = $region5
    $region4: #{tpu_custom_call.1} parent=1 // pred_region
      %s16 = ssub.s32 4096, 4096
      %17 = vsyncadd [#allocation3], %s16
      %s18 = sshll.u32 [#allocation2], 4
      %s19 = int_to_ptr.vmem [resolvable:$true] %s18
      %24 = dma.hbm_to_vmem [thread:$0]  %s0, 4096, %s19, [#allocation3], 128, 128, 8
    $region5: #{tpu_custom_call.1} parent=1 // pred_fallthru
      _
    // Predicated region
    $region6: #{tpu_custom_call.1} parent=1 // pred_check
      _
    $region7: #{tpu_custom_call.1} parent=1 // pred_check_branch
      %26 = sbr.rel (0) target = $region9
    $region8: #{tpu_custom_call.1} parent=1 // pred_region
      %s28 = ssub.s32 4096, 4096
      %29 = vsyncadd [#allocation6], %s28
      %s30 = sshll.u32 [#allocation5], 4
      %s31 = int_to_ptr.vmem [resolvable:$true] %s30
      %36 = dma.hbm_to_vmem [thread:$0]  %s1, 4096, %s31, [#allocation6], 128, 128, 8
    $region9: #{tpu_custom_call.1} parent=1 // pred_fallthru
      _
    // Predicated region
    $region10: #{tpu_custom_call.1} parent=1 // pred_check
      _
    $region11: #{tpu_custom_call.1} parent=1 // pred_check_branch
      %38 = sbr.rel (0) target = $region13
    $region12: #{tpu_custom_call.1} parent=1 // pred_region
      %s40 = ssub.s32 4096, 4096
      %41 = vsyncadd [#allocation6], %s40
      %s42 = sshll.u32 [#allocation7], 4
      %s43 = int_to_ptr.vmem [resolvable:$true] %s42
      %48 = dma.hbm_to_vmem [thread:$0]  %s2, 4096, %s43, [#allocation6], 128, 128, 8
    $region13: #{tpu_custom_call.1} parent=1 // pred_fallthru
      _
    // Predicated region
    $region14: #{tpu_custom_call.1} parent=1 // pred_check
      _
    $region15: #{tpu_custom_call.1} parent=1 // pred_check_branch
      %50 = sbr.rel (0) target = $region17
    $region16: #{tpu_custom_call.1} parent=1 // pred_region
      %s52 = ssub.s32 4096, 4096
      %53 = vsyncadd [#allocation9], %s52
      %s54 = sshll.u32 [#allocation8], 4
      %s55 = int_to_ptr.vmem [resolvable:$true] %s54
      %60 = dma.hbm_to_vmem [thread:$0]  %s3, 4096, %s55, [#allocation9], 128, 128, 8
    $region17: #{tpu_custom_call.1} parent=1 // pred_fallthru
      _
    // Predicated region
    $region18: #{tpu_custom_call.1} parent=1 // pred_check
      _
    $region19: #{tpu_custom_call.1} parent=1 // pred_check_branch
      %62 = sbr.rel (0) target = $region21
    $region20: #{tpu_custom_call.1} parent=1 // pred_region
      %63 = dma.done [#allocation3], 4096
    $region21: #{tpu_custom_call.1} parent=1 // pred_fallthru
      _
    // Predicated region
    $region22: #{tpu_custom_call.1} parent=1 // pred_check
      _
    $region23: #{tpu_custom_call.1} parent=1 // pred_check_branch
      %65 = sbr.rel (0) target = $region25
    $region24: #{tpu_custom_call.1} parent=1 // pred_region
      %66 = dma.done [#allocation6], 4096
    $region25: #{tpu_custom_call.1} parent=1 // pred_fallthru
      _
    // Predicated region
    $region26: #{tpu_custom_call.1} parent=1 // pred_check
      _
    $region27: #{tpu_custom_call.1} parent=1 // pred_check_branch
      %68 = sbr.rel (0) target = $region29
    $region28: #{tpu_custom_call.1} parent=1 // pred_region
      %69 = dma.done [#allocation6], 4096
    $region29: #{tpu_custom_call.1} parent=1 // pred_fallthru
      _
    // Predicated region
    $region30: #{tpu_custom_call.1} parent=1 // pred_check
      _
    $region31: #{tpu_custom_call.1} parent=1 // pred_check_branch
      %71 = sbr.rel (0) target = $region33
    $region32: #{tpu_custom_call.1} parent=1 // pred_region
      %72 = dma.done [#allocation9], 4096
    $region33: #{tpu_custom_call.1} parent=1 // pred_fallthru
      _
    %v73 = vld [vmem:[#allocation2] sm:$0xff]
    %v74 = vld [vmem:[#allocation2 + $0x8] sm:$0xff]
    %v75 = vld [vmem:[#allocation2 + $0x10] sm:$0xff]
    %v76 = vld [vmem:[#allocation2 + $0x18] sm:$0xff]
    %v77 = vld [vmem:[#allocation2 + $0x20] sm:$0xff]
    %v78 = vld [vmem:[#allocation2 + $0x28] sm:$0xff]
    %v79 = vld [vmem:[#allocation2 + $0x30] sm:$0xff]
    %v80 = vld [vmem:[#allocation2 + $0x38] sm:$0xff]
    %v81 = vld [vmem:[#allocation2 + $0x40] sm:$0xff]
    %v82 = vld [vmem:[#allocation2 + $0x48] sm:$0xff]
    %v83 = vld [vmem:[#allocation2 + $0x50] sm:$0xff]
    %v84 = vld [vmem:[#allocation2 + $0x58] sm:$0xff]
    %v85 = vld [vmem:[#allocation2 + $0x60] sm:$0xff]
    %v86 = vld [vmem:[#allocation2 + $0x68] sm:$0xff]
    %v87 = vld [vmem:[#allocation2 + $0x70] sm:$0xff]
    %v88 = vld [vmem:[#allocation2 + $0x78] sm:$0xff]
    %v89 = vld [vmem:[#allocation2 + $0x80] sm:$0xff]
    %v90 = vld [vmem:[#allocation2 + $0x88] sm:$0xff]
    %v91 = vld [vmem:[#allocation2 + $0x90] sm:$0xff]
    %v92 = vld [vmem:[#allocation2 + $0x98] sm:$0xff]
    %v93 = vld [vmem:[#allocation2 + $0xa0] sm:$0xff]
    %v94 = vld [vmem:[#allocation2 + $0xa8] sm:$0xff]
    %v95 = vld [vmem:[#allocation2 + $0xb0] sm:$0xff]
    %v96 = vld [vmem:[#allocation2 + $0xb8] sm:$0xff]
    %v97 = vld [vmem:[#allocation2 + $0xc0] sm:$0xff]
    %v98 = vld [vmem:[#allocation2 + $0xc8] sm:$0xff]
    %v99 = vld [vmem:[#allocation2 + $0xd0] sm:$0xff]
    %v100 = vld [vmem:[#allocation2 + $0xd8] sm:$0xff]
    %v101 = vld [vmem:[#allocation2 + $0xe0] sm:$0xff]
    %v102 = vld [vmem:[#allocation2 + $0xe8] sm:$0xff]
    %v103 = vld [vmem:[#allocation2 + $0xf0] sm:$0xff]
    %v104 = vld [vmem:[#allocation2 + $0xf8] sm:$0xff]
    %v105 = vld [vmem:[#allocation5] sm:$0xff]
    %v106 = vld [vmem:[#allocation5 + $0x8] sm:$0xff]
    %v107 = vld [vmem:[#allocation5 + $0x10] sm:$0xff]
    %v108 = vld [vmem:[#allocation5 + $0x18] sm:$0xff]
    %v109 = vld [vmem:[#allocation5 + $0x20] sm:$0xff]
    %v110 = vld [vmem:[#allocation5 + $0x28] sm:$0xff]
    %v111 = vld [vmem:[#allocation5 + $0x30] sm:$0xff]
    %v112 = vld [vmem:[#allocation5 + $0x38] sm:$0xff]
    %v113 = vld [vmem:[#allocation5 + $0x40] sm:$0xff]
    %v114 = vld [vmem:[#allocation5 + $0x48] sm:$0xff]
    %v115 = vld [vmem:[#allocation5 + $0x50] sm:$0xff]
    %v116 = vld [vmem:[#allocation5 + $0x58] sm:$0xff]
    %v117 = vld [vmem:[#allocation5 + $0x60] sm:$0xff]
    %v118 = vld [vmem:[#allocation5 + $0x68] sm:$0xff]
    %v119 = vld [vmem:[#allocation5 + $0x70] sm:$0xff]
    %v120 = vld [vmem:[#allocation5 + $0x78] sm:$0xff]
    %v121 = vld [vmem:[#allocation5 + $0x80] sm:$0xff]
    %v122 = vld [vmem:[#allocation5 + $0x88] sm:$0xff]
    %v123 = vld [vmem:[#allocation5 + $0x90] sm:$0xff]
    %v124 = vld [vmem:[#allocation5 + $0x98] sm:$0xff]
    %v125 = vld [vmem:[#allocation5 + $0xa0] sm:$0xff]
    %v126 = vld [vmem:[#allocation5 + $0xa8] sm:$0xff]
    %v127 = vld [vmem:[#allocation5 + $0xb0] sm:$0xff]
    %v128 = vld [vmem:[#allocation5 + $0xb8] sm:$0xff]
    %v129 = vld [vmem:[#allocation5 + $0xc0] sm:$0xff]
    %v130 = vld [vmem:[#allocation5 + $0xc8] sm:$0xff]
    %v131 = vld [vmem:[#allocation5 + $0xd0] sm:$0xff]
    %v132 = vld [vmem:[#allocation5 + $0xd8] sm:$0xff]
    %v133 = vld [vmem:[#allocation5 + $0xe0] sm:$0xff]
    %v134 = vld [vmem:[#allocation5 + $0xe8] sm:$0xff]
    %v135 = vld [vmem:[#allocation5 + $0xf0] sm:$0xff]
    %v136 = vld [vmem:[#allocation5 + $0xf8] sm:$0xff]
    %v137 = vld [vmem:[#allocation7] sm:$0xff]
    %v138 = vld [vmem:[#allocation7 + $0x8] sm:$0xff]
    %v139 = vld [vmem:[#allocation7 + $0x10] sm:$0xff]
    %v140 = vld [vmem:[#allocation7 + $0x18] sm:$0xff]
    %v141 = vld [vmem:[#allocation7 + $0x20] sm:$0xff]
    %v142 = vld [vmem:[#allocation7 + $0x28] sm:$0xff]
    %v143 = vld [vmem:[#allocation7 + $0x30] sm:$0xff]
    %v144 = vld [vmem:[#allocation7 + $0x38] sm:$0xff]
    %v145 = vld [vmem:[#allocation7 + $0x40] sm:$0xff]
    %v146 = vld [vmem:[#allocation7 + $0x48] sm:$0xff]
    %v147 = vld [vmem:[#allocation7 + $0x50] sm:$0xff]
    %v148 = vld [vmem:[#allocation7 + $0x58] sm:$0xff]
    %v149 = vld [vmem:[#allocation7 + $0x60] sm:$0xff]
    %v150 = vld [vmem:[#allocation7 + $0x68] sm:$0xff]
    %v151 = vld [vmem:[#allocation7 + $0x70] sm:$0xff]
    %v152 = vld [vmem:[#allocation7 + $0x78] sm:$0xff]
    %v153 = vld [vmem:[#allocation7 + $0x80] sm:$0xff]
    %v154 = vld [vmem:[#allocation7 + $0x88] sm:$0xff]
    %v155 = vld [vmem:[#allocation7 + $0x90] sm:$0xff]
    %v156 = vld [vmem:[#allocation7 + $0x98] sm:$0xff]
    %v157 = vld [vmem:[#allocation7 + $0xa0] sm:$0xff]
    %v158 = vld [vmem:[#allocation7 + $0xa8] sm:$0xff]
    %v159 = vld [vmem:[#allocation7 + $0xb0] sm:$0xff]
    %v160 = vld [vmem:[#allocation7 + $0xb8] sm:$0xff]
    %v161 = vld [vmem:[#allocation7 + $0xc0] sm:$0xff]
    %v162 = vld [vmem:[#allocation7 + $0xc8] sm:$0xff]
    %v163 = vld [vmem:[#allocation7 + $0xd0] sm:$0xff]
    %v164 = vld [vmem:[#allocation7 + $0xd8] sm:$0xff]
    %v165 = vld [vmem:[#allocation7 + $0xe0] sm:$0xff]
    %v166 = vld [vmem:[#allocation7 + $0xe8] sm:$0xff]
    %v167 = vld [vmem:[#allocation7 + $0xf0] sm:$0xff]
    %v168 = vld [vmem:[#allocation7 + $0xf8] sm:$0xff]
    %v169 = vld [vmem:[#allocation8] sm:$0xff]
    %v170 = vld [vmem:[#allocation8 + $0x8] sm:$0xff]
    %v171 = vld [vmem:[#allocation8 + $0x10] sm:$0xff]
    %v172 = vld [vmem:[#allocation8 + $0x18] sm:$0xff]
    %v173 = vld [vmem:[#allocation8 + $0x20] sm:$0xff]
    %v174 = vld [vmem:[#allocation8 + $0x28] sm:$0xff]
    %v175 = vld [vmem:[#allocation8 + $0x30] sm:$0xff]
    %v176 = vld [vmem:[#allocation8 + $0x38] sm:$0xff]
    %v177 = vld [vmem:[#allocation8 + $0x40] sm:$0xff]
    %v178 = vld [vmem:[#allocation8 + $0x48] sm:$0xff]
    %v179 = vld [vmem:[#allocation8 + $0x50] sm:$0xff]
    %v180 = vld [vmem:[#allocation8 + $0x58] sm:$0xff]
    %v181 = vld [vmem:[#allocation8 + $0x60] sm:$0xff]
    %v182 = vld [vmem:[#allocation8 + $0x68] sm:$0xff]
    %v183 = vld [vmem:[#allocation8 + $0x70] sm:$0xff]
    %v184 = vld [vmem:[#allocation8 + $0x78] sm:$0xff]
    %v185 = vld [vmem:[#allocation8 + $0x80] sm:$0xff]
    %v186 = vld [vmem:[#allocation8 + $0x88] sm:$0xff]
    %v187 = vld [vmem:[#allocation8 + $0x90] sm:$0xff]
    %v188 = vld [vmem:[#allocation8 + $0x98] sm:$0xff]
    %v189 = vld [vmem:[#allocation8 + $0xa0] sm:$0xff]
    %v190 = vld [vmem:[#allocation8 + $0xa8] sm:$0xff]
    %v191 = vld [vmem:[#allocation8 + $0xb0] sm:$0xff]
    %v192 = vld [vmem:[#allocation8 + $0xb8] sm:$0xff]
    %v193 = vld [vmem:[#allocation8 + $0xc0] sm:$0xff]
    %v194 = vld [vmem:[#allocation8 + $0xc8] sm:$0xff]
    %v195 = vld [vmem:[#allocation8 + $0xd0] sm:$0xff]
    %v196 = vld [vmem:[#allocation8 + $0xd8] sm:$0xff]
    %v197 = vld [vmem:[#allocation8 + $0xe0] sm:$0xff]
    %v198 = vld [vmem:[#allocation8 + $0xe8] sm:$0xff]
    %v199 = vld [vmem:[#allocation8 + $0xf0] sm:$0xff]
    %v200 = vld [vmem:[#allocation8 + $0xf8] sm:$0xff]
    %201 = vmatprep.subr.mxu0 0.0
    %202 = vmatpush1.xpose.msra.mxu0 %v169
    %203 = vmatprep.subr.mxu0 0.0
    %204 = vmatpush1.xpose.msra.mxu0 %v170
    %205 = vmatprep.subr.mxu0 0.0
    %206 = vmatpush1.xpose.msra.mxu0 %v171
    %207 = vmatprep.subr.mxu0 0.0
    %208 = vmatpush1.xpose.msra.mxu0 %v172
    %209 = vmatprep.subr.mxu0 0.0
    %210 = vmatpush1.xpose.msra.mxu0 %v173
    %211 = vmatprep.subr.mxu0 0.0
    %212 = vmatpush1.xpose.msra.mxu0 %v174
    %213 = vmatprep.subr.mxu0 0.0
    %214 = vmatpush1.xpose.msra.mxu0 %v175
    %215 = vmatprep.subr.mxu0 0.0
    %216 = vmatpush1.xpose.msra.mxu0 %v176
    %217 = vmatprep.subr.mxu0 0.0
    %218 = vmatpush1.xpose.msra.mxu0 %v177
    %219 = vmatprep.subr.mxu0 0.0
    %220 = vmatpush1.xpose.msra.mxu0 %v178
    %221 = vmatprep.subr.mxu0 0.0
    %222 = vmatpush1.xpose.msra.mxu0 %v179
    %223 = vmatprep.subr.mxu0 0.0
    %224 = vmatpush1.xpose.msra.mxu0 %v180
    %225 = vmatprep.subr.mxu0 0.0
    %226 = vmatpush1.xpose.msra.mxu0 %v181
    %227 = vmatprep.subr.mxu0 0.0
    %228 = vmatpush1.xpose.msra.mxu0 %v182
    %229 = vmatprep.subr.mxu0 0.0
    %230 = vmatpush1.xpose.msra.mxu0 %v183
    %231 = vmatprep.subr.mxu0 0.0
    %232 = vmatpush1.xpose.msra.mxu0 %v184
    %233 = vmatprep.subr.mxu0 0.0
    %234 = vmatpush1.xpose.msra.mxu0 %v185
    %235 = vmatprep.subr.mxu0 0.0
    %236 = vmatpush1.xpose.msra.mxu0 %v186
    %237 = vmatprep.subr.mxu0 0.0
    %238 = vmatpush1.xpose.msra.mxu0 %v187
    %239 = vmatprep.subr.mxu0 0.0
    %240 = vmatpush1.xpose.msra.mxu0 %v188
    %241 = vmatprep.subr.mxu0 0.0
    %242 = vmatpush1.xpose.msra.mxu0 %v189
    %243 = vmatprep.subr.mxu0 0.0
    %244 = vmatpush1.xpose.msra.mxu0 %v190
    %245 = vmatprep.subr.mxu0 0.0
    %246 = vmatpush1.xpose.msra.mxu0 %v191
    %247 = vmatprep.subr.mxu0 0.0
    %248 = vmatpush1.xpose.msra.mxu0 %v192
    %249 = vmatprep.subr.mxu0 0.0
    %250 = vmatpush1.xpose.msra.mxu0 %v193
    %251 = vmatprep.subr.mxu0 0.0
    %252 = vmatpush1.xpose.msra.mxu0 %v194
    %253 = vmatprep.subr.mxu0 0.0
    %254 = vmatpush1.xpose.msra.mxu0 %v195
    %255 = vmatprep.subr.mxu0 0.0
    %256 = vmatpush1.xpose.msra.mxu0 %v196
    %257 = vmatprep.subr.mxu0 0.0
    %258 = vmatpush1.xpose.msra.mxu0 %v197
    %259 = vmatprep.subr.mxu0 0.0
    %260 = vmatpush1.xpose.msra.mxu0 %v198
    %261 = vmatprep.subr.mxu0 0.0
    %262 = vmatpush1.xpose.msra.mxu0 %v199
    %263 = vmatprep.subr.mxu0 0.0
    %264 = vmatpush1.xpose.msra.mxu0 %v200
    %265 = vmatprep.mubr.f32.mxu0 0.0
    %266 = vmatmul.mubr.f32.gmra.mrb[0].mxu0 %v73
    %v267 = vpop.f32.mrb[0].mxu0
    %v268 = vadd.f32 0.0, %v267
    %v269 = vpop.f32.mrb[0].mxu0
    %v270 = vadd.f32 0.0, %v269
    %271 = vmatprep.mubr.f32.mxu0 0.0
    %272 = vmatmul.mubr.f32.gmra.mrb[0].mxu0 %v74
    %v273 = vpop.f32.mrb[0].mxu0
    %v274 = vadd.f32 0.0, %v273
    %v275 = vpop.f32.mrb[0].mxu0
    %v276 = vadd.f32 0.0, %v275
    %277 = vmatprep.mubr.f32.mxu0 0.0
    %278 = vmatmul.mubr.f32.gmra.mrb[0].mxu0 %v75
    %v279 = vpop.f32.mrb[0].mxu0
    %v280 = vadd.f32 0.0, %v279
    %v281 = vpop.f32.mrb[0].mxu0
    %v282 = vadd.f32 0.0, %v281
    %283 = vmatprep.mubr.f32.mxu0 0.0
    %284 = vmatmul.mubr.f32.gmra.mrb[0].mxu0 %v76
    %v285 = vpop.f32.mrb[0].mxu0
    %v286 = vadd.f32 0.0, %v285
    %v287 = vpop.f32.mrb[0].mxu0
    %v288 = vadd.f32 0.0, %v287
    %289 = vmatprep.mubr.f32.mxu0 0.0
    %290 = vmatmul.mubr.f32.gmra.mrb[0].mxu0 %v77
    %v291 = vpop.f32.mrb[0].mxu0
    %v292 = vadd.f32 0.0, %v291
    %v293 = vpop.f32.mrb[0].mxu0
    %v294 = vadd.f32 0.0, %v293
    %295 = vmatprep.mubr.f32.mxu0 0.0
    %296 = vmatmul.mubr.f32.gmra.mrb[0].mxu0 %v78
    %v297 = vpop.f32.mrb[0].mxu0
    %v298 = vadd.f32 0.0, %v297
    %v299 = vpop.f32.mrb[0].mxu0
    %v300 = vadd.f32 0.0, %v299
    %301 = vmatprep.mubr.f32.mxu0 0.0
    %302 = vmatmul.mubr.f32.gmra.mrb[0].mxu0 %v79
    %v303 = vpop.f32.mrb[0].mxu0
    %v304 = vadd.f32 0.0, %v303
    %v305 = vpop.f32.mrb[0].mxu0
    %v306 = vadd.f32 0.0, %v305
    %307 = vmatprep.mubr.f32.mxu0 0.0
    %308 = vmatmul.mubr.f32.gmra.mrb[0].mxu0 %v80
    %v309 = vpop.f32.mrb[0].mxu0
    %v310 = vadd.f32 0.0, %v309
    %v311 = vpop.f32.mrb[0].mxu0
    %v312 = vadd.f32 0.0, %v311
    %313 = vmatprep.mubr.f32.mxu0 0.0
    %314 = vmatmul.mubr.f32.gmra.mrb[0].mxu0 %v81
    %v315 = vpop.f32.mrb[0].mxu0
    %v316 = vadd.f32 0.0, %v315
    %v317 = vpop.f32.mrb[0].mxu0
    %v318 = vadd.f32 0.0, %v317
    %319 = vmatprep.mubr.f32.mxu0 0.0
    %320 = vmatmul.mubr.f32.gmra.mrb[0].mxu0 %v82
    %v321 = vpop.f32.mrb[0].mxu0
    %v322 = vadd.f32 0.0, %v321
    %v323 = vpop.f32.mrb[0].mxu0
    %v324 = vadd.f32 0.0, %v323
    %325 = vmatprep.mubr.f32.mxu0 0.0
    %326 = vmatmul.mubr.f32.gmra.mrb[0].mxu0 %v83
    %v327 = vpop.f32.mrb[0].mxu0
    %v328 = vadd.f32 0.0, %v327
    %v329 = vpop.f32.mrb[0].mxu0
    %v330 = vadd.f32 0.0, %v329
    %331 = vmatprep.mubr.f32.mxu0 0.0
    %332 = vmatmul.mubr.f32.gmra.mrb[0].mxu0 %v84
    %v333 = vpop.f32.mrb[0].mxu0
    %v334 = vadd.f32 0.0, %v333
    %v335 = vpop.f32.mrb[0].mxu0
    %v336 = vadd.f32 0.0, %v335
    %337 = vmatprep.mubr.f32.mxu0 0.0
    %338 = vmatmul.mubr.f32.gmra.mrb[0].mxu0 %v85
    %v339 = vpop.f32.mrb[0].mxu0
    %v340 = vadd.f32 0.0, %v339
    %v341 = vpop.f32.mrb[0].mxu0
    %v342 = vadd.f32 0.0, %v341
    %343 = vmatprep.mubr.f32.mxu0 0.0
    %344 = vmatmul.mubr.f32.gmra.mrb[0].mxu0 %v86
    %v345 = vpop.f32.mrb[0].mxu0
    %v346 = vadd.f32 0.0, %v345
    %v347 = vpop.f32.mrb[0].mxu0
    %v348 = vadd.f32 0.0, %v347
    %349 = vmatprep.mubr.f32.mxu0 0.0
    %350 = vmatmul.mubr.f32.gmra.mrb[0].mxu0 %v87
    %v351 = vpop.f32.mrb[0].mxu0
    %v352 = vadd.f32 0.0, %v351
    %v353 = vpop.f32.mrb[0].mxu0
    %v354 = vadd.f32 0.0, %v353
    %355 = vmatprep.mubr.f32.mxu0 0.0
    %356 = vmatmul.mubr.f32.gmra.mrb[0].mxu0 %v88
    %v357 = vpop.f32.mrb[0].mxu0
    %v358 = vadd.f32 0.0, %v357
    %v359 = vpop.f32.mrb[0].mxu0
    %v360 = vadd.f32 0.0, %v359
    %361 = vmatprep.mubr.f32.mxu0 0.0
    %362 = vmatmul.mubr.f32.gmra.mrb[0].mxu0 %v89
    %v363 = vpop.f32.mrb[0].mxu0
    %v364 = vadd.f32 0.0, %v363
    %v365 = vpop.f32.mrb[0].mxu0
    %v366 = vadd.f32 0.0, %v365
    %367 = vmatprep.mubr.f32.mxu0 0.0
    %368 = vmatmul.mubr.f32.gmra.mrb[0].mxu0 %v90
    %v369 = vpop.f32.mrb[0].mxu0
    %v370 = vadd.f32 0.0, %v369
    %v371 = vpop.f32.mrb[0].mxu0
    %v372 = vadd.f32 0.0, %v371
    %373 = vmatprep.mubr.f32.mxu0 0.0
    %374 = vmatmul.mubr.f32.gmra.mrb[0].mxu0 %v91
    %v375 = vpop.f32.mrb[0].mxu0
    %v376 = vadd.f32 0.0, %v375
    %v377 = vpop.f32.mrb[0].mxu0
    %v378 = vadd.f32 0.0, %v377
    %379 = vmatprep.mubr.f32.mxu0 0.0
    %380 = vmatmul.mubr.f32.gmra.mrb[0].mxu0 %v92
    %v381 = vpop.f32.mrb[0].mxu0
    %v382 = vadd.f32 0.0, %v381
    %v383 = vpop.f32.mrb[0].mxu0
    %v384 = vadd.f32 0.0, %v383
    %385 = vmatprep.mubr.f32.mxu0 0.0
    %386 = vmatmul.mubr.f32.gmra.mrb[0].mxu0 %v93
    %v387 = vpop.f32.mrb[0].mxu0
    %v388 = vadd.f32 0.0, %v387
    %v389 = vpop.f32.mrb[0].mxu0
    %v390 = vadd.f32 0.0, %v389
    %391 = vmatprep.mubr.f32.mxu0 0.0
    %392 = vmatmul.mubr.f32.gmra.mrb[0].mxu0 %v94
    %v393 = vpop.f32.mrb[0].mxu0
    %v394 = vadd.f32 0.0, %v393
    %v395 = vpop.f32.mrb[0].mxu0
    %v396 = vadd.f32 0.0, %v395
    %397 = vmatprep.mubr.f32.mxu0 0.0
    %398 = vmatmul.mubr.f32.gmra.mrb[0].mxu0 %v95
    %v399 = vpop.f32.mrb[0].mxu0
    %v400 = vadd.f32 0.0, %v399
    %v401 = vpop.f32.mrb[0].mxu0
    %v402 = vadd.f32 0.0, %v401
    %403 = vmatprep.mubr.f32.mxu0 0.0
    %404 = vmatmul.mubr.f32.gmra.mrb[0].mxu0 %v96
    %v405 = vpop.f32.mrb[0].mxu0
    %v406 = vadd.f32 0.0, %v405
    %v407 = vpop.f32.mrb[0].mxu0
    %v408 = vadd.f32 0.0, %v407
    %409 = vmatprep.mubr.f32.mxu0 0.0
    %410 = vmatmul.mubr.f32.gmra.mrb[0].mxu0 %v97
    %v411 = vpop.f32.mrb[0].mxu0
    %v412 = vadd.f32 0.0, %v411
    %v413 = vpop.f32.mrb[0].mxu0
    %v414 = vadd.f32 0.0, %v413
    %415 = vmatprep.mubr.f32.mxu0 0.0
    %416 = vmatmul.mubr.f32.gmra.mrb[0].mxu0 %v98
    %v417 = vpop.f32.mrb[0].mxu0
    %v418 = vadd.f32 0.0, %v417
    %v419 = vpop.f32.mrb[0].mxu0
    %v420 = vadd.f32 0.0, %v419
    %421 = vmatprep.mubr.f32.mxu0 0.0
    %422 = vmatmul.mubr.f32.gmra.mrb[0].mxu0 %v99
    %v423 = vpop.f32.mrb[0].mxu0
    %v424 = vadd.f32 0.0, %v423
    %v425 = vpop.f32.mrb[0].mxu0
    %v426 = vadd.f32 0.0, %v425
    %427 = vmatprep.mubr.f32.mxu0 0.0
    %428 = vmatmul.mubr.f32.gmra.mrb[0].mxu0 %v100
    %v429 = vpop.f32.mrb[0].mxu0
    %v430 = vadd.f32 0.0, %v429
    %v431 = vpop.f32.mrb[0].mxu0
    %v432 = vadd.f32 0.0, %v431
    %433 = vmatprep.mubr.f32.mxu0 0.0
    %434 = vmatmul.mubr.f32.gmra.mrb[0].mxu0 %v101
    %v435 = vpop.f32.mrb[0].mxu0
    %v436 = vadd.f32 0.0, %v435
    %v437 = vpop.f32.mrb[0].mxu0
    %v438 = vadd.f32 0.0, %v437
    %439 = vmatprep.mubr.f32.mxu0 0.0
    %440 = vmatmul.mubr.f32.gmra.mrb[0].mxu0 %v102
    %v441 = vpop.f32.mrb[0].mxu0
    %v442 = vadd.f32 0.0, %v441
    %v443 = vpop.f32.mrb[0].mxu0
    %v444 = vadd.f32 0.0, %v443
    %445 = vmatprep.mubr.f32.mxu0 0.0
    %446 = vmatmul.mubr.f32.gmra.mrb[0].mxu0 %v103
    %v447 = vpop.f32.mrb[0].mxu0
    %v448 = vadd.f32 0.0, %v447
    %v449 = vpop.f32.mrb[0].mxu0
    %v450 = vadd.f32 0.0, %v449
    %451 = vmatprep.mubr.f32.mxu0 0.0
    %452 = vmatmul.mubr.f32.gmra.mrb[0].mxu0 %v104
    %v453 = vpop.f32.mrb[0].mxu0
    %v454 = vadd.f32 0.0, %v453
    %v455 = vpop.f32.mrb[0].mxu0
    %v456 = vadd.f32 0.0, %v455
    %457 = vdwg.mxu0
    %458 = vmatprep.subr.mxu0 0.0
    %459 = vmatpush1.xpose.msra.mxu0 %v137
    %460 = vmatprep.subr.mxu0 0.0
    %461 = vmatpush1.xpose.msra.mxu0 %v138
    %462 = vmatprep.subr.mxu0 0.0
    %463 = vmatpush1.xpose.msra.mxu0 %v139
    %464 = vmatprep.subr.mxu0 0.0
    %465 = vmatpush1.xpose.msra.mxu0 %v140
    %466 = vmatprep.subr.mxu0 0.0
    %467 = vmatpush1.xpose.msra.mxu0 %v141
    %468 = vmatprep.subr.mxu0 0.0
    %469 = vmatpush1.xpose.msra.mxu0 %v142
    %470 = vmatprep.subr.mxu0 0.0
    %471 = vmatpush1.xpose.msra.mxu0 %v143
    %472 = vmatprep.subr.mxu0 0.0
    %473 = vmatpush1.xpose.msra.mxu0 %v144
    %474 = vmatprep.subr.mxu0 0.0
    %475 = vmatpush1.xpose.msra.mxu0 %v145
    %476 = vmatprep.subr.mxu0 0.0
    %477 = vmatpush1.xpose.msra.mxu0 %v146
    %478 = vmatprep.subr.mxu0 0.0
    %479 = vmatpush1.xpose.msra.mxu0 %v147
    %480 = vmatprep.subr.mxu0 0.0
    %481 = vmatpush1.xpose.msra.mxu0 %v148
    %482 = vmatprep.subr.mxu0 0.0
    %483 = vmatpush1.xpose.msra.mxu0 %v149
    %484 = vmatprep.subr.mxu0 0.0
    %485 = vmatpush1.xpose.msra.mxu0 %v150
    %486 = vmatprep.subr.mxu0 0.0
    %487 = vmatpush1.xpose.msra.mxu0 %v151
    %488 = vmatprep.subr.mxu0 0.0
    %489 = vmatpush1.xpose.msra.mxu0 %v152
    %490 = vmatprep.subr.mxu0 0.0
    %491 = vmatpush1.xpose.msra.mxu0 %v153
    %492 = vmatprep.subr.mxu0 0.0
    %493 = vmatpush1.xpose.msra.mxu0 %v154
    %494 = vmatprep.subr.mxu0 0.0
    %495 = vmatpush1.xpose.msra.mxu0 %v155
    %496 = vmatprep.subr.mxu0 0.0
    %497 = vmatpush1.xpose.msra.mxu0 %v156
    %498 = vmatprep.subr.mxu0 0.0
    %499 = vmatpush1.xpose.msra.mxu0 %v157
    %500 = vmatprep.subr.mxu0 0.0
    %501 = vmatpush1.xpose.msra.mxu0 %v158
    %502 = vmatprep.subr.mxu0 0.0
    %503 = vmatpush1.xpose.msra.mxu0 %v159
    %504 = vmatprep.subr.mxu0 0.0
    %505 = vmatpush1.xpose.msra.mxu0 %v160
    %506 = vmatprep.subr.mxu0 0.0
    %507 = vmatpush1.xpose.msra.mxu0 %v161
    %508 = vmatprep.subr.mxu0 0.0
    %509 = vmatpush1.xpose.msra.mxu0 %v162
    %510 = vmatprep.subr.mxu0 0.0
    %511 = vmatpush1.xpose.msra.mxu0 %v163
    %512 = vmatprep.subr.mxu0 0.0
    %513 = vmatpush1.xpose.msra.mxu0 %v164
    %514 = vmatprep.subr.mxu0 0.0
    %515 = vmatpush1.xpose.msra.mxu0 %v165
    %516 = vmatprep.subr.mxu0 0.0
    %517 = vmatpush1.xpose.msra.mxu0 %v166
    %518 = vmatprep.subr.mxu0 0.0
    %519 = vmatpush1.xpose.msra.mxu0 %v167
    %520 = vmatprep.subr.mxu0 0.0
    %521 = vmatpush1.xpose.msra.mxu0 %v168
    %522 = vmatprep.mubr.f32.mxu0 0.0
    %523 = vmatmul.mubr.f32.gmra.mrb[0].mxu0 %v105
    %v524 = vpop.f32.mrb[0].mxu0
    %v525 = vadd.f32 0.0, %v524
    %v526 = vpop.f32.mrb[0].mxu0
    %v527 = vadd.f32 0.0, %v526
    %528 = vmatprep.mubr.f32.mxu0 0.0
    %529 = vmatmul.mubr.f32.gmra.mrb[0].mxu0 %v106
    %v530 = vpop.f32.mrb[0].mxu0
    %v531 = vadd.f32 0.0, %v530
    %v532 = vpop.f32.mrb[0].mxu0
    %v533 = vadd.f32 0.0, %v532
    %534 = vmatprep.mubr.f32.mxu0 0.0
    %535 = vmatmul.mubr.f32.gmra.mrb[0].mxu0 %v107
    %v536 = vpop.f32.mrb[0].mxu0
    %v537 = vadd.f32 0.0, %v536
    %v538 = vpop.f32.mrb[0].mxu0
    %v539 = vadd.f32 0.0, %v538
    %540 = vmatprep.mubr.f32.mxu0 0.0
    %541 = vmatmul.mubr.f32.gmra.mrb[0].mxu0 %v108
    %v542 = vpop.f32.mrb[0].mxu0
    %v543 = vadd.f32 0.0, %v542
    %v544 = vpop.f32.mrb[0].mxu0
    %v545 = vadd.f32 0.0, %v544
    %546 = vmatprep.mubr.f32.mxu0 0.0
    %547 = vmatmul.mubr.f32.gmra.mrb[0].mxu0 %v109
    %v548 = vpop.f32.mrb[0].mxu0
    %v549 = vadd.f32 0.0, %v548
    %v550 = vpop.f32.mrb[0].mxu0
    %v551 = vadd.f32 0.0, %v550
    %552 = vmatprep.mubr.f32.mxu0 0.0
    %553 = vmatmul.mubr.f32.gmra.mrb[0].mxu0 %v110
    %v554 = vpop.f32.mrb[0].mxu0
    %v555 = vadd.f32 0.0, %v554
    %v556 = vpop.f32.mrb[0].mxu0
    %v557 = vadd.f32 0.0, %v556
    %558 = vmatprep.mubr.f32.mxu0 0.0
    %559 = vmatmul.mubr.f32.gmra.mrb[0].mxu0 %v111
    %v560 = vpop.f32.mrb[0].mxu0
    %v561 = vadd.f32 0.0, %v560
    %v562 = vpop.f32.mrb[0].mxu0
    %v563 = vadd.f32 0.0, %v562
    %564 = vmatprep.mubr.f32.mxu0 0.0
    %565 = vmatmul.mubr.f32.gmra.mrb[0].mxu0 %v112
    %v566 = vpop.f32.mrb[0].mxu0
    %v567 = vadd.f32 0.0, %v566
    %v568 = vpop.f32.mrb[0].mxu0
    %v569 = vadd.f32 0.0, %v568
    %570 = vmatprep.mubr.f32.mxu0 0.0
    %571 = vmatmul.mubr.f32.gmra.mrb[0].mxu0 %v113
    %v572 = vpop.f32.mrb[0].mxu0
    %v573 = vadd.f32 0.0, %v572
    %v574 = vpop.f32.mrb[0].mxu0
    %v575 = vadd.f32 0.0, %v574
    %576 = vmatprep.mubr.f32.mxu0 0.0
    %577 = vmatmul.mubr.f32.gmra.mrb[0].mxu0 %v114
    %v578 = vpop.f32.mrb[0].mxu0
    %v579 = vadd.f32 0.0, %v578
    %v580 = vpop.f32.mrb[0].mxu0
    %v581 = vadd.f32 0.0, %v580
    %582 = vmatprep.mubr.f32.mxu0 0.0
    %583 = vmatmul.mubr.f32.gmra.mrb[0].mxu0 %v115
    %v584 = vpop.f32.mrb[0].mxu0
    %v585 = vadd.f32 0.0, %v584
    %v586 = vpop.f32.mrb[0].mxu0
    %v587 = vadd.f32 0.0, %v586
    %588 = vmatprep.mubr.f32.mxu0 0.0
    %589 = vmatmul.mubr.f32.gmra.mrb[0].mxu0 %v116
    %v590 = vpop.f32.mrb[0].mxu0
    %v591 = vadd.f32 0.0, %v590
    %v592 = vpop.f32.mrb[0].mxu0
    %v593 = vadd.f32 0.0, %v592
    %594 = vmatprep.mubr.f32.mxu0 0.0
    %595 = vmatmul.mubr.f32.gmra.mrb[0].mxu0 %v117
    %v596 = vpop.f32.mrb[0].mxu0
    %v597 = vadd.f32 0.0, %v596
    %v598 = vpop.f32.mrb[0].mxu0
    %v599 = vadd.f32 0.0, %v598
    %600 = vmatprep.mubr.f32.mxu0 0.0
    %601 = vmatmul.mubr.f32.gmra.mrb[0].mxu0 %v118
    %v602 = vpop.f32.mrb[0].mxu0
    %v603 = vadd.f32 0.0, %v602
    %v604 = vpop.f32.mrb[0].mxu0
    %v605 = vadd.f32 0.0, %v604
    %606 = vmatprep.mubr.f32.mxu0 0.0
    %607 = vmatmul.mubr.f32.gmra.mrb[0].mxu0 %v119
    %v608 = vpop.f32.mrb[0].mxu0
    %v609 = vadd.f32 0.0, %v608
    %v610 = vpop.f32.mrb[0].mxu0
    %v611 = vadd.f32 0.0, %v610
    %612 = vmatprep.mubr.f32.mxu0 0.0
    %613 = vmatmul.mubr.f32.gmra.mrb[0].mxu0 %v120
    %v614 = vpop.f32.mrb[0].mxu0
    %v615 = vadd.f32 0.0, %v614
    %v616 = vpop.f32.mrb[0].mxu0
    %v617 = vadd.f32 0.0, %v616
    %618 = vmatprep.mubr.f32.mxu0 0.0
    %619 = vmatmul.mubr.f32.gmra.mrb[0].mxu0 %v121
    %v620 = vpop.f32.mrb[0].mxu0
    %v621 = vadd.f32 0.0, %v620
    %v622 = vpop.f32.mrb[0].mxu0
    %v623 = vadd.f32 0.0, %v622
    %624 = vmatprep.mubr.f32.mxu0 0.0
    %625 = vmatmul.mubr.f32.gmra.mrb[0].mxu0 %v122
    %v626 = vpop.f32.mrb[0].mxu0
    %v627 = vadd.f32 0.0, %v626
    %v628 = vpop.f32.mrb[0].mxu0
    %v629 = vadd.f32 0.0, %v628
    %630 = vmatprep.mubr.f32.mxu0 0.0
    %631 = vmatmul.mubr.f32.gmra.mrb[0].mxu0 %v123
    %v632 = vpop.f32.mrb[0].mxu0
    %v633 = vadd.f32 0.0, %v632
    %v634 = vpop.f32.mrb[0].mxu0
    %v635 = vadd.f32 0.0, %v634
    %636 = vmatprep.mubr.f32.mxu0 0.0
    %637 = vmatmul.mubr.f32.gmra.mrb[0].mxu0 %v124
    %v638 = vpop.f32.mrb[0].mxu0
    %v639 = vadd.f32 0.0, %v638
    %v640 = vpop.f32.mrb[0].mxu0
    %v641 = vadd.f32 0.0, %v640
    %642 = vmatprep.mubr.f32.mxu0 0.0
    %643 = vmatmul.mubr.f32.gmra.mrb[0].mxu0 %v125
    %v644 = vpop.f32.mrb[0].mxu0
    %v645 = vadd.f32 0.0, %v644
    %v646 = vpop.f32.mrb[0].mxu0
    %v647 = vadd.f32 0.0, %v646
    %648 = vmatprep.mubr.f32.mxu0 0.0
    %649 = vmatmul.mubr.f32.gmra.mrb[0].mxu0 %v126
    %v650 = vpop.f32.mrb[0].mxu0
    %v651 = vadd.f32 0.0, %v650
    %v652 = vpop.f32.mrb[0].mxu0
    %v653 = vadd.f32 0.0, %v652
    %654 = vmatprep.mubr.f32.mxu0 0.0
    %655 = vmatmul.mubr.f32.gmra.mrb[0].mxu0 %v127
    %v656 = vpop.f32.mrb[0].mxu0
    %v657 = vadd.f32 0.0, %v656
    %v658 = vpop.f32.mrb[0].mxu0
    %v659 = vadd.f32 0.0, %v658
    %660 = vmatprep.mubr.f32.mxu0 0.0
    %661 = vmatmul.mubr.f32.gmra.mrb[0].mxu0 %v128
    %v662 = vpop.f32.mrb[0].mxu0
    %v663 = vadd.f32 0.0, %v662
    %v664 = vpop.f32.mrb[0].mxu0
    %v665 = vadd.f32 0.0, %v664
    %666 = vmatprep.mubr.f32.mxu0 0.0
    %667 = vmatmul.mubr.f32.gmra.mrb[0].mxu0 %v129
    %v668 = vpop.f32.mrb[0].mxu0
    %v669 = vadd.f32 0.0, %v668
    %v670 = vpop.f32.mrb[0].mxu0
    %v671 = vadd.f32 0.0, %v670
    %672 = vmatprep.mubr.f32.mxu0 0.0
    %673 = vmatmul.mubr.f32.gmra.mrb[0].mxu0 %v130
    %v674 = vpop.f32.mrb[0].mxu0
    %v675 = vadd.f32 0.0, %v674
    %v676 = vpop.f32.mrb[0].mxu0
    %v677 = vadd.f32 0.0, %v676
    %678 = vmatprep.mubr.f32.mxu0 0.0
    %679 = vmatmul.mubr.f32.gmra.mrb[0].mxu0 %v131
    %v680 = vpop.f32.mrb[0].mxu0
    %v681 = vadd.f32 0.0, %v680
    %v682 = vpop.f32.mrb[0].mxu0
    %v683 = vadd.f32 0.0, %v682
    %684 = vmatprep.mubr.f32.mxu0 0.0
    %685 = vmatmul.mubr.f32.gmra.mrb[0].mxu0 %v132
    %v686 = vpop.f32.mrb[0].mxu0
    %v687 = vadd.f32 0.0, %v686
    %v688 = vpop.f32.mrb[0].mxu0
    %v689 = vadd.f32 0.0, %v688
    %690 = vmatprep.mubr.f32.mxu0 0.0
    %691 = vmatmul.mubr.f32.gmra.mrb[0].mxu0 %v133
    %v692 = vpop.f32.mrb[0].mxu0
    %v693 = vadd.f32 0.0, %v692
    %v694 = vpop.f32.mrb[0].mxu0
    %v695 = vadd.f32 0.0, %v694
    %696 = vmatprep.mubr.f32.mxu0 0.0
    %697 = vmatmul.mubr.f32.gmra.mrb[0].mxu0 %v134
    %v698 = vpop.f32.mrb[0].mxu0
    %v699 = vadd.f32 0.0, %v698
    %v700 = vpop.f32.mrb[0].mxu0
    %v701 = vadd.f32 0.0, %v700
    %702 = vmatprep.mubr.f32.mxu0 0.0
    %703 = vmatmul.mubr.f32.gmra.mrb[0].mxu0 %v135
    %v704 = vpop.f32.mrb[0].mxu0
    %v705 = vadd.f32 0.0, %v704
    %v706 = vpop.f32.mrb[0].mxu0
    %v707 = vadd.f32 0.0, %v706
    %708 = vmatprep.mubr.f32.mxu0 0.0
    %709 = vmatmul.mubr.f32.gmra.mrb[0].mxu0 %v136
    %v710 = vpop.f32.mrb[0].mxu0
    %v711 = vadd.f32 0.0, %v710
    %v712 = vpop.f32.mrb[0].mxu0
    %v713 = vadd.f32 0.0, %v712
    %714 = vdwg.mxu0
    %v715 = vmul.f32 %v73, %v105
    %v716 = vmul.f32 %v74, %v106
    %v717 = vmul.f32 %v75, %v107
    %v718 = vmul.f32 %v76, %v108
    %v719 = vmul.f32 %v77, %v109
    %v720 = vmul.f32 %v78, %v110
    %v721 = vmul.f32 %v79, %v111
    %v722 = vmul.f32 %v80, %v112
    %v723 = vmul.f32 %v81, %v113
    %v724 = vmul.f32 %v82, %v114
    %v725 = vmul.f32 %v83, %v115
    %v726 = vmul.f32 %v84, %v116
    %v727 = vmul.f32 %v85, %v117
    %v728 = vmul.f32 %v86, %v118
    %v729 = vmul.f32 %v87, %v119
    %v730 = vmul.f32 %v88, %v120
    %v731 = vmul.f32 %v89, %v121
    %v732 = vmul.f32 %v90, %v122
    %v733 = vmul.f32 %v91, %v123
    %v734 = vmul.f32 %v92, %v124
    %v735 = vmul.f32 %v93, %v125
    %v736 = vmul.f32 %v94, %v126
    %v737 = vmul.f32 %v95, %v127
    %v738 = vmul.f32 %v96, %v128
    %v739 = vmul.f32 %v97, %v129
    %v740 = vmul.f32 %v98, %v130
    %v741 = vmul.f32 %v99, %v131
    %v742 = vmul.f32 %v100, %v132
    %v743 = vmul.f32 %v101, %v133
    %v744 = vmul.f32 %v102, %v134
    %v745 = vmul.f32 %v103, %v135
    %v746 = vmul.f32 %v104, %v136
    %747 = vadd.xlane.f32.xlu0 %v715
    %v748 = vpop.xlane.xlu0 %747
    %749 = vadd.xlane.f32.xlu0 %v716
    %v750 = vpop.xlane.xlu0 %749
    %751 = vadd.xlane.f32.xlu0 %v717
    %v752 = vpop.xlane.xlu0 %751
    %753 = vadd.xlane.f32.xlu0 %v718
    %v754 = vpop.xlane.xlu0 %753
    %755 = vadd.xlane.f32.xlu0 %v719
    %v756 = vpop.xlane.xlu0 %755
    %757 = vadd.xlane.f32.xlu0 %v720
    %v758 = vpop.xlane.xlu0 %757
    %759 = vadd.xlane.f32.xlu0 %v721
    %v760 = vpop.xlane.xlu0 %759
    %761 = vadd.xlane.f32.xlu0 %v722
    %v762 = vpop.xlane.xlu0 %761
    %763 = vadd.xlane.f32.xlu0 %v723
    %v764 = vpop.xlane.xlu0 %763
    %765 = vadd.xlane.f32.xlu0 %v724
    %v766 = vpop.xlane.xlu0 %765
    %767 = vadd.xlane.f32.xlu0 %v725
    %v768 = vpop.xlane.xlu0 %767
    %769 = vadd.xlane.f32.xlu0 %v726
    %v770 = vpop.xlane.xlu0 %769
    %771 = vadd.xlane.f32.xlu0 %v727
    %v772 = vpop.xlane.xlu0 %771
    %773 = vadd.xlane.f32.xlu0 %v728
    %v774 = vpop.xlane.xlu0 %773
    %775 = vadd.xlane.f32.xlu0 %v729
    %v776 = vpop.xlane.xlu0 %775
    %777 = vadd.xlane.f32.xlu0 %v730
    %v778 = vpop.xlane.xlu0 %777
    %779 = vadd.xlane.f32.xlu0 %v731
    %v780 = vpop.xlane.xlu0 %779
    %781 = vadd.xlane.f32.xlu0 %v732
    %v782 = vpop.xlane.xlu0 %781
    %783 = vadd.xlane.f32.xlu0 %v733
    %v784 = vpop.xlane.xlu0 %783
    %785 = vadd.xlane.f32.xlu0 %v734
    %v786 = vpop.xlane.xlu0 %785
    %787 = vadd.xlane.f32.xlu0 %v735
    %v788 = vpop.xlane.xlu0 %787
    %789 = vadd.xlane.f32.xlu0 %v736
    %v790 = vpop.xlane.xlu0 %789
    %791 = vadd.xlane.f32.xlu0 %v737
    %v792 = vpop.xlane.xlu0 %791
    %793 = vadd.xlane.f32.xlu0 %v738
    %v794 = vpop.xlane.xlu0 %793
    %795 = vadd.xlane.f32.xlu0 %v739
    %v796 = vpop.xlane.xlu0 %795
    %797 = vadd.xlane.f32.xlu0 %v740
    %v798 = vpop.xlane.xlu0 %797
    %799 = vadd.xlane.f32.xlu0 %v741
    %v800 = vpop.xlane.xlu0 %799
    %801 = vadd.xlane.f32.xlu0 %v742
    %v802 = vpop.xlane.xlu0 %801
    %803 = vadd.xlane.f32.xlu0 %v743
    %v804 = vpop.xlane.xlu0 %803
    %805 = vadd.xlane.f32.xlu0 %v744
    %v806 = vpop.xlane.xlu0 %805
    %807 = vadd.xlane.f32.xlu0 %v745
    %v808 = vpop.xlane.xlu0 %807
    %809 = vadd.xlane.f32.xlu0 %v746
    %v810 = vpop.xlane.xlu0 %809
    %v811 = vsub.f32 %v748, 0.2
    %v812 = vsub.f32 %v750, 0.2
    %v813 = vsub.f32 %v752, 0.2
    %v814 = vsub.f32 %v754, 0.2
    %v815 = vsub.f32 %v756, 0.2
    %v816 = vsub.f32 %v758, 0.2
    %v817 = vsub.f32 %v760, 0.2
    %v818 = vsub.f32 %v762, 0.2
    %v819 = vsub.f32 %v764, 0.2
    %v820 = vsub.f32 %v766, 0.2
    %v821 = vsub.f32 %v768, 0.2
    %v822 = vsub.f32 %v770, 0.2
    %v823 = vsub.f32 %v772, 0.2
    %v824 = vsub.f32 %v774, 0.2
    %v825 = vsub.f32 %v776, 0.2
    %v826 = vsub.f32 %v778, 0.2
    %v827 = vsub.f32 %v780, 0.2
    %v828 = vsub.f32 %v782, 0.2
    %v829 = vsub.f32 %v784, 0.2
    %v830 = vsub.f32 %v786, 0.2
    %v831 = vsub.f32 %v788, 0.2
    %v832 = vsub.f32 %v790, 0.2
    %v833 = vsub.f32 %v792, 0.2
    %v834 = vsub.f32 %v794, 0.2
    %v835 = vsub.f32 %v796, 0.2
    %v836 = vsub.f32 %v798, 0.2
    %v837 = vsub.f32 %v800, 0.2
    %v838 = vsub.f32 %v802, 0.2
    %v839 = vsub.f32 %v804, 0.2
    %v840 = vsub.f32 %v806, 0.2
    %v841 = vsub.f32 %v808, 0.2
    %v842 = vsub.f32 %v810, 0.2
    %v843 = vlaneseq
    %v844 = vshrl.u32 %v843, 7
    %v845 = vadd.s32 %v844, 8
    %v846 = vadd.s32 %v844, 16
    %v847 = vadd.s32 %v844, 24
    %v848 = vadd.s32 %v844, 32
    %v849 = vadd.s32 %v844, 40
    %v850 = vadd.s32 %v844, 48
    %v851 = vadd.s32 %v844, 56
    %v852 = vadd.s32 %v844, 64
    %v853 = vadd.s32 %v844, 72
    %v854 = vadd.s32 %v844, 80
    %v855 = vadd.s32 %v844, 88
    %v856 = vadd.s32 %v844, 96
    %v857 = vadd.s32 %v844, 104
    %v858 = vadd.s32 %v844, 112
    %v859 = vadd.s32 %v844, 120
    %v860 = vadd.s32 %v844, 128
    %v861 = vadd.s32 %v844, 136
    %v862 = vadd.s32 %v844, 144
    %v863 = vadd.s32 %v844, 152
    %v864 = vadd.s32 %v844, 160
    %v865 = vadd.s32 %v844, 168
    %v866 = vadd.s32 %v844, 176
    %v867 = vadd.s32 %v844, 184
    %v868 = vadd.s32 %v844, 192
    %v869 = vadd.s32 %v844, 200
    %v870 = vadd.s32 %v844, 208
    %v871 = vadd.s32 %v844, 216
    %v872 = vadd.s32 %v844, 224
    %v873 = vadd.s32 %v844, 232
    %v874 = vadd.s32 %v844, 240
    %v875 = vadd.s32 %v844, 248
    %s876 = smul.u32 0, 256
    %v877 = vstv %s876
    %v878 = vadd.s32 %v844, %v877
    %v879 = vadd.s32 %v845, %v877
    %v880 = vadd.s32 %v846, %v877
    %v881 = vadd.s32 %v847, %v877
    %v882 = vadd.s32 %v848, %v877
    %v883 = vadd.s32 %v849, %v877
    %v884 = vadd.s32 %v850, %v877
    %v885 = vadd.s32 %v851, %v877
    %v886 = vadd.s32 %v852, %v877
    %v887 = vadd.s32 %v853, %v877
    %v888 = vadd.s32 %v854, %v877
    %v889 = vadd.s32 %v855, %v877
    %v890 = vadd.s32 %v856, %v877
    %v891 = vadd.s32 %v857, %v877
    %v892 = vadd.s32 %v858, %v877
    %v893 = vadd.s32 %v859, %v877
    %v894 = vadd.s32 %v860, %v877
    %v895 = vadd.s32 %v861, %v877
    %v896 = vadd.s32 %v862, %v877
    %v897 = vadd.s32 %v863, %v877
    %v898 = vadd.s32 %v864, %v877
    %v899 = vadd.s32 %v865, %v877
    %v900 = vadd.s32 %v866, %v877
    %v901 = vadd.s32 %v867, %v877
    %v902 = vadd.s32 %v868, %v877
    %v903 = vadd.s32 %v869, %v877
    %v904 = vadd.s32 %v870, %v877
    %v905 = vadd.s32 %v871, %v877
    %v906 = vadd.s32 %v872, %v877
    %v907 = vadd.s32 %v873, %v877
    %v908 = vadd.s32 %v874, %v877
    %v909 = vadd.s32 %v875, %v877
    %v910 = vlaneseq
    %v911 = vand.u32 %v910, 127
    %v912 = vadd.s32 %v911, 128
    %vm913 = vcmp.eq.s32.totalorder %v878, %v911
    %vm914 = vcmp.eq.s32.totalorder %v878, %v912
    %vm915 = vcmp.eq.s32.totalorder %v879, %v911
    %vm916 = vcmp.eq.s32.totalorder %v879, %v912
    %vm917 = vcmp.eq.s32.totalorder %v880, %v911
    %vm918 = vcmp.eq.s32.totalorder %v880, %v912
    %vm919 = vcmp.eq.s32.totalorder %v881, %v911
    %vm920 = vcmp.eq.s32.totalorder %v881, %v912
    %vm921 = vcmp.eq.s32.totalorder %v882, %v911
    %vm922 = vcmp.eq.s32.totalorder %v882, %v912
    %vm923 = vcmp.eq.s32.totalorder %v883, %v911
    %vm924 = vcmp.eq.s32.totalorder %v883, %v912
    %vm925 = vcmp.eq.s32.totalorder %v884, %v911
    %vm926 = vcmp.eq.s32.totalorder %v884, %v912
    %vm927 = vcmp.eq.s32.totalorder %v885, %v911
    %vm928 = vcmp.eq.s32.totalorder %v885, %v912
    %vm929 = vcmp.eq.s32.totalorder %v886, %v911
    %vm930 = vcmp.eq.s32.totalorder %v886, %v912
    %vm931 = vcmp.eq.s32.totalorder %v887, %v911
    %vm932 = vcmp.eq.s32.totalorder %v887, %v912
    %vm933 = vcmp.eq.s32.totalorder %v888, %v911
    %vm934 = vcmp.eq.s32.totalorder %v888, %v912
    %vm935 = vcmp.eq.s32.totalorder %v889, %v911
    %vm936 = vcmp.eq.s32.totalorder %v889, %v912
    %vm937 = vcmp.eq.s32.totalorder %v890, %v911
    %vm938 = vcmp.eq.s32.totalorder %v890, %v912
    %vm939 = vcmp.eq.s32.totalorder %v891, %v911
    %vm940 = vcmp.eq.s32.totalorder %v891, %v912
    %vm941 = vcmp.eq.s32.totalorder %v892, %v911
    %vm942 = vcmp.eq.s32.totalorder %v892, %v912
    %vm943 = vcmp.eq.s32.totalorder %v893, %v911
    %vm944 = vcmp.eq.s32.totalorder %v893, %v912
    %vm945 = vcmp.eq.s32.totalorder %v894, %v911
    %vm946 = vcmp.eq.s32.totalorder %v894, %v912
    %vm947 = vcmp.eq.s32.totalorder %v895, %v911
    %vm948 = vcmp.eq.s32.totalorder %v895, %v912
    %vm949 = vcmp.eq.s32.totalorder %v896, %v911
    %vm950 = vcmp.eq.s32.totalorder %v896, %v912
    %vm951 = vcmp.eq.s32.totalorder %v897, %v911
    %vm952 = vcmp.eq.s32.totalorder %v897, %v912
    %vm953 = vcmp.eq.s32.totalorder %v898, %v911
    %vm954 = vcmp.eq.s32.totalorder %v898, %v912
    %vm955 = vcmp.eq.s32.totalorder %v899, %v911
    %vm956 = vcmp.eq.s32.totalorder %v899, %v912
    %vm957 = vcmp.eq.s32.totalorder %v900, %v911
    %vm958 = vcmp.eq.s32.totalorder %v900, %v912
    %vm959 = vcmp.eq.s32.totalorder %v901, %v911
    %vm960 = vcmp.eq.s32.totalorder %v901, %v912
    %vm961 = vcmp.eq.s32.totalorder %v902, %v911
    %vm962 = vcmp.eq.s32.totalorder %v902, %v912
    %vm963 = vcmp.eq.s32.totalorder %v903, %v911
    %vm964 = vcmp.eq.s32.totalorder %v903, %v912
    %vm965 = vcmp.eq.s32.totalorder %v904, %v911
    %vm966 = vcmp.eq.s32.totalorder %v904, %v912
    %vm967 = vcmp.eq.s32.totalorder %v905, %v911
    %vm968 = vcmp.eq.s32.totalorder %v905, %v912
    %vm969 = vcmp.eq.s32.totalorder %v906, %v911
    %vm970 = vcmp.eq.s32.totalorder %v906, %v912
    %vm971 = vcmp.eq.s32.totalorder %v907, %v911
    %vm972 = vcmp.eq.s32.totalorder %v907, %v912
    %vm973 = vcmp.eq.s32.totalorder %v908, %v911
    %vm974 = vcmp.eq.s32.totalorder %v908, %v912
    %vm975 = vcmp.eq.s32.totalorder %v909, %v911
    %vm976 = vcmp.eq.s32.totalorder %v909, %v912
    %v977 = vsub.f32 %v268, %v811
    %v978 = vsub.f32 %v270, %v811
    %v979 = vsub.f32 %v274, %v812
    %v980 = vsub.f32 %v276, %v812
    %v981 = vsub.f32 %v280, %v813
    %v982 = vsub.f32 %v282, %v813
    %v983 = vsub.f32 %v286, %v814
    %v984 = vsub.f32 %v288, %v814
    %v985 = vsub.f32 %v292, %v815
    %v986 = vsub.f32 %v294, %v815
    %v987 = vsub.f32 %v298, %v816
    %v988 = vsub.f32 %v300, %v816
    %v989 = vsub.f32 %v304, %v817
    %v990 = vsub.f32 %v306, %v817
    %v991 = vsub.f32 %v310, %v818
    %v992 = vsub.f32 %v312, %v818
    %v993 = vsub.f32 %v316, %v819
    %v994 = vsub.f32 %v318, %v819
    %v995 = vsub.f32 %v322, %v820
    %v996 = vsub.f32 %v324, %v820
    %v997 = vsub.f32 %v328, %v821
    %v998 = vsub.f32 %v330, %v821
    %v999 = vsub.f32 %v334, %v822
    %v1000 = vsub.f32 %v336, %v822
    %v1001 = vsub.f32 %v340, %v823
    %v1002 = vsub.f32 %v342, %v823
    %v1003 = vsub.f32 %v346, %v824
    %v1004 = vsub.f32 %v348, %v824
    %v1005 = vsub.f32 %v352, %v825
    %v1006 = vsub.f32 %v354, %v825
    %v1007 = vsub.f32 %v358, %v826
    %v1008 = vsub.f32 %v360, %v826
    %v1009 = vsub.f32 %v364, %v827
    %v1010 = vsub.f32 %v366, %v827
    %v1011 = vsub.f32 %v370, %v828
    %v1012 = vsub.f32 %v372, %v828
    %v1013 = vsub.f32 %v376, %v829
    %v1014 = vsub.f32 %v378, %v829
    %v1015 = vsub.f32 %v382, %v830
    %v1016 = vsub.f32 %v384, %v830
    %v1017 = vsub.f32 %v388, %v831
    %v1018 = vsub.f32 %v390, %v831
    %v1019 = vsub.f32 %v394, %v832
    %v1020 = vsub.f32 %v396, %v832
    %v1021 = vsub.f32 %v400, %v833
    %v1022 = vsub.f32 %v402, %v833
    %v1023 = vsub.f32 %v406, %v834
    %v1024 = vsub.f32 %v408, %v834
    %v1025 = vsub.f32 %v412, %v835
    %v1026 = vsub.f32 %v414, %v835
    %v1027 = vsub.f32 %v418, %v836
    %v1028 = vsub.f32 %v420, %v836
    %v1029 = vsub.f32 %v424, %v837
    %v1030 = vsub.f32 %v426, %v837
    %v1031 = vsub.f32 %v430, %v838
    %v1032 = vsub.f32 %v432, %v838
    %v1033 = vsub.f32 %v436, %v839
    %v1034 = vsub.f32 %v438, %v839
    %v1035 = vsub.f32 %v442, %v840
    %v1036 = vsub.f32 %v444, %v840
    %v1037 = vsub.f32 %v448, %v841
    %v1038 = vsub.f32 %v450, %v841
    %v1039 = vsub.f32 %v454, %v842
    %v1040 = vsub.f32 %v456, %v842
    %v1041 = vmax.f32 %v977, 0.0
    %v1042 = vmax.f32 %v978, 0.0
    %v1043 = vmax.f32 %v979, 0.0
    %v1044 = vmax.f32 %v980, 0.0
    %v1045 = vmax.f32 %v981, 0.0
    %v1046 = vmax.f32 %v982, 0.0
    %v1047 = vmax.f32 %v983, 0.0
    %v1048 = vmax.f32 %v984, 0.0
    %v1049 = vmax.f32 %v985, 0.0
    %v1050 = vmax.f32 %v986, 0.0
    %v1051 = vmax.f32 %v987, 0.0
    %v1052 = vmax.f32 %v988, 0.0
    %v1053 = vmax.f32 %v989, 0.0
    %v1054 = vmax.f32 %v990, 0.0
    %v1055 = vmax.f32 %v991, 0.0
    %v1056 = vmax.f32 %v992, 0.0
    %v1057 = vmax.f32 %v993, 0.0
    %v1058 = vmax.f32 %v994, 0.0
    %v1059 = vmax.f32 %v995, 0.0
    %v1060 = vmax.f32 %v996, 0.0
    %v1061 = vmax.f32 %v997, 0.0
    %v1062 = vmax.f32 %v998, 0.0
    %v1063 = vmax.f32 %v999, 0.0
    %v1064 = vmax.f32 %v1000, 0.0
    %v1065 = vmax.f32 %v1001, 0.0
    %v1066 = vmax.f32 %v1002, 0.0
    %v1067 = vmax.f32 %v1003, 0.0
    %v1068 = vmax.f32 %v1004, 0.0
    %v1069 = vmax.f32 %v1005, 0.0
    %v1070 = vmax.f32 %v1006, 0.0
    %v1071 = vmax.f32 %v1007, 0.0
    %v1072 = vmax.f32 %v1008, 0.0
    %v1073 = vmax.f32 %v1009, 0.0
    %v1074 = vmax.f32 %v1010, 0.0
    %v1075 = vmax.f32 %v1011, 0.0
    %v1076 = vmax.f32 %v1012, 0.0
    %v1077 = vmax.f32 %v1013, 0.0
    %v1078 = vmax.f32 %v1014, 0.0
    %v1079 = vmax.f32 %v1015, 0.0
    %v1080 = vmax.f32 %v1016, 0.0
    %v1081 = vmax.f32 %v1017, 0.0
    %v1082 = vmax.f32 %v1018, 0.0
    %v1083 = vmax.f32 %v1019, 0.0
    %v1084 = vmax.f32 %v1020, 0.0
    %v1085 = vmax.f32 %v1021, 0.0
    %v1086 = vmax.f32 %v1022, 0.0
    %v1087 = vmax.f32 %v1023, 0.0
    %v1088 = vmax.f32 %v1024, 0.0
    %v1089 = vmax.f32 %v1025, 0.0
    %v1090 = vmax.f32 %v1026, 0.0
    %v1091 = vmax.f32 %v1027, 0.0
    %v1092 = vmax.f32 %v1028, 0.0
    %v1093 = vmax.f32 %v1029, 0.0
    %v1094 = vmax.f32 %v1030, 0.0
    %v1095 = vmax.f32 %v1031, 0.0
    %v1096 = vmax.f32 %v1032, 0.0
    %v1097 = vmax.f32 %v1033, 0.0
    %v1098 = vmax.f32 %v1034, 0.0
    %v1099 = vmax.f32 %v1035, 0.0
    %v1100 = vmax.f32 %v1036, 0.0
    %v1101 = vmax.f32 %v1037, 0.0
    %v1102 = vmax.f32 %v1038, 0.0
    %v1103 = vmax.f32 %v1039, 0.0
    %v1104 = vmax.f32 %v1040, 0.0
    %v1105 = vsel %vm913, 0.0, %v1041
    %v1106 = vsel %vm914, 0.0, %v1042
    %v1107 = vsel %vm915, 0.0, %v1043
    %v1108 = vsel %vm916, 0.0, %v1044
    %v1109 = vsel %vm917, 0.0, %v1045
    %v1110 = vsel %vm918, 0.0, %v1046
    %v1111 = vsel %vm919, 0.0, %v1047
    %v1112 = vsel %vm920, 0.0, %v1048
    %v1113 = vsel %vm921, 0.0, %v1049
    %v1114 = vsel %vm922, 0.0, %v1050
    %v1115 = vsel %vm923, 0.0, %v1051
    %v1116 = vsel %vm924, 0.0, %v1052
    %v1117 = vsel %vm925, 0.0, %v1053
    %v1118 = vsel %vm926, 0.0, %v1054
    %v1119 = vsel %vm927, 0.0, %v1055
    %v1120 = vsel %vm928, 0.0, %v1056
    %v1121 = vsel %vm929, 0.0, %v1057
    %v1122 = vsel %vm930, 0.0, %v1058
    %v1123 = vsel %vm931, 0.0, %v1059
    %v1124 = vsel %vm932, 0.0, %v1060
    %v1125 = vsel %vm933, 0.0, %v1061
    %v1126 = vsel %vm934, 0.0, %v1062
    %v1127 = vsel %vm935, 0.0, %v1063
    %v1128 = vsel %vm936, 0.0, %v1064
    %v1129 = vsel %vm937, 0.0, %v1065
    %v1130 = vsel %vm938, 0.0, %v1066
    %v1131 = vsel %vm939, 0.0, %v1067
    %v1132 = vsel %vm940, 0.0, %v1068
    %v1133 = vsel %vm941, 0.0, %v1069
    %v1134 = vsel %vm942, 0.0, %v1070
    %v1135 = vsel %vm943, 0.0, %v1071
    %v1136 = vsel %vm944, 0.0, %v1072
    %v1137 = vsel %vm945, 0.0, %v1073
    %v1138 = vsel %vm946, 0.0, %v1074
    %v1139 = vsel %vm947, 0.0, %v1075
    %v1140 = vsel %vm948, 0.0, %v1076
    %v1141 = vsel %vm949, 0.0, %v1077
    %v1142 = vsel %vm950, 0.0, %v1078
    %v1143 = vsel %vm951, 0.0, %v1079
    %v1144 = vsel %vm952, 0.0, %v1080
    %v1145 = vsel %vm953, 0.0, %v1081
    %v1146 = vsel %vm954, 0.0, %v1082
    %v1147 = vsel %vm955, 0.0, %v1083
    %v1148 = vsel %vm956, 0.0, %v1084
    %v1149 = vsel %vm957, 0.0, %v1085
    %v1150 = vsel %vm958, 0.0, %v1086
    %v1151 = vsel %vm959, 0.0, %v1087
    %v1152 = vsel %vm960, 0.0, %v1088
    %v1153 = vsel %vm961, 0.0, %v1089
    %v1154 = vsel %vm962, 0.0, %v1090
    %v1155 = vsel %vm963, 0.0, %v1091
    %v1156 = vsel %vm964, 0.0, %v1092
    %v1157 = vsel %vm965, 0.0, %v1093
    %v1158 = vsel %vm966, 0.0, %v1094
    %v1159 = vsel %vm967, 0.0, %v1095
    %v1160 = vsel %vm968, 0.0, %v1096
    %v1161 = vsel %vm969, 0.0, %v1097
    %v1162 = vsel %vm970, 0.0, %v1098
    %v1163 = vsel %vm971, 0.0, %v1099
    %v1164 = vsel %vm972, 0.0, %v1100
    %v1165 = vsel %vm973, 0.0, %v1101
    %v1166 = vsel %vm974, 0.0, %v1102
    %v1167 = vsel %vm975, 0.0, %v1103
    %v1168 = vsel %vm976, 0.0, %v1104
    %v1169 = vsub.f32 %v525, %v811
    %v1170 = vsub.f32 %v527, %v811
    %v1171 = vsub.f32 %v531, %v812
    %v1172 = vsub.f32 %v533, %v812
    %v1173 = vsub.f32 %v537, %v813
    %v1174 = vsub.f32 %v539, %v813
    %v1175 = vsub.f32 %v543, %v814
    %v1176 = vsub.f32 %v545, %v814
    %v1177 = vsub.f32 %v549, %v815
    %v1178 = vsub.f32 %v551, %v815
    %v1179 = vsub.f32 %v555, %v816
    %v1180 = vsub.f32 %v557, %v816
    %v1181 = vsub.f32 %v561, %v817
    %v1182 = vsub.f32 %v563, %v817
    %v1183 = vsub.f32 %v567, %v818
    %v1184 = vsub.f32 %v569, %v818
    %v1185 = vsub.f32 %v573, %v819
    %v1186 = vsub.f32 %v575, %v819
    %v1187 = vsub.f32 %v579, %v820
    %v1188 = vsub.f32 %v581, %v820
    %v1189 = vsub.f32 %v585, %v821
    %v1190 = vsub.f32 %v587, %v821
    %v1191 = vsub.f32 %v591, %v822
    %v1192 = vsub.f32 %v593, %v822
    %v1193 = vsub.f32 %v597, %v823
    %v1194 = vsub.f32 %v599, %v823
    %v1195 = vsub.f32 %v603, %v824
    %v1196 = vsub.f32 %v605, %v824
    %v1197 = vsub.f32 %v609, %v825
    %v1198 = vsub.f32 %v611, %v825
    %v1199 = vsub.f32 %v615, %v826
    %v1200 = vsub.f32 %v617, %v826
    %v1201 = vsub.f32 %v621, %v827
    %v1202 = vsub.f32 %v623, %v827
    %v1203 = vsub.f32 %v627, %v828
    %v1204 = vsub.f32 %v629, %v828
    %v1205 = vsub.f32 %v633, %v829
    %v1206 = vsub.f32 %v635, %v829
    %v1207 = vsub.f32 %v639, %v830
    %v1208 = vsub.f32 %v641, %v830
    %v1209 = vsub.f32 %v645, %v831
    %v1210 = vsub.f32 %v647, %v831
    %v1211 = vsub.f32 %v651, %v832
    %v1212 = vsub.f32 %v653, %v832
    %v1213 = vsub.f32 %v657, %v833
    %v1214 = vsub.f32 %v659, %v833
    %v1215 = vsub.f32 %v663, %v834
    %v1216 = vsub.f32 %v665, %v834
    %v1217 = vsub.f32 %v669, %v835
    %v1218 = vsub.f32 %v671, %v835
    %v1219 = vsub.f32 %v675, %v836
    %v1220 = vsub.f32 %v677, %v836
    %v1221 = vsub.f32 %v681, %v837
    %v1222 = vsub.f32 %v683, %v837
    %v1223 = vsub.f32 %v687, %v838
    %v1224 = vsub.f32 %v689, %v838
    %v1225 = vsub.f32 %v693, %v839
    %v1226 = vsub.f32 %v695, %v839
    %v1227 = vsub.f32 %v699, %v840
    %v1228 = vsub.f32 %v701, %v840
    %v1229 = vsub.f32 %v705, %v841
    %v1230 = vsub.f32 %v707, %v841
    %v1231 = vsub.f32 %v711, %v842
    %v1232 = vsub.f32 %v713, %v842
    %v1233 = vmax.f32 %v1169, 0.0
    %v1234 = vmax.f32 %v1170, 0.0
    %v1235 = vmax.f32 %v1171, 0.0
    %v1236 = vmax.f32 %v1172, 0.0
    %v1237 = vmax.f32 %v1173, 0.0
    %v1238 = vmax.f32 %v1174, 0.0
    %v1239 = vmax.f32 %v1175, 0.0
    %v1240 = vmax.f32 %v1176, 0.0
    %v1241 = vmax.f32 %v1177, 0.0
    %v1242 = vmax.f32 %v1178, 0.0
    %v1243 = vmax.f32 %v1179, 0.0
    %v1244 = vmax.f32 %v1180, 0.0
    %v1245 = vmax.f32 %v1181, 0.0
    %v1246 = vmax.f32 %v1182, 0.0
    %v1247 = vmax.f32 %v1183, 0.0
    %v1248 = vmax.f32 %v1184, 0.0
    %v1249 = vmax.f32 %v1185, 0.0
    %v1250 = vmax.f32 %v1186, 0.0
    %v1251 = vmax.f32 %v1187, 0.0
    %v1252 = vmax.f32 %v1188, 0.0
    %v1253 = vmax.f32 %v1189, 0.0
    %v1254 = vmax.f32 %v1190, 0.0
    %v1255 = vmax.f32 %v1191, 0.0
    %v1256 = vmax.f32 %v1192, 0.0
    %v1257 = vmax.f32 %v1193, 0.0
    %v1258 = vmax.f32 %v1194, 0.0
    %v1259 = vmax.f32 %v1195, 0.0
    %v1260 = vmax.f32 %v1196, 0.0
    %v1261 = vmax.f32 %v1197, 0.0
    %v1262 = vmax.f32 %v1198, 0.0
    %v1263 = vmax.f32 %v1199, 0.0
    %v1264 = vmax.f32 %v1200, 0.0
    %v1265 = vmax.f32 %v1201, 0.0
    %v1266 = vmax.f32 %v1202, 0.0
    %v1267 = vmax.f32 %v1203, 0.0
    %v1268 = vmax.f32 %v1204, 0.0
    %v1269 = vmax.f32 %v1205, 0.0
    %v1270 = vmax.f32 %v1206, 0.0
    %v1271 = vmax.f32 %v1207, 0.0
    %v1272 = vmax.f32 %v1208, 0.0
    %v1273 = vmax.f32 %v1209, 0.0
    %v1274 = vmax.f32 %v1210, 0.0
    %v1275 = vmax.f32 %v1211, 0.0
    %v1276 = vmax.f32 %v1212, 0.0
    %v1277 = vmax.f32 %v1213, 0.0
    %v1278 = vmax.f32 %v1214, 0.0
    %v1279 = vmax.f32 %v1215, 0.0
    %v1280 = vmax.f32 %v1216, 0.0
    %v1281 = vmax.f32 %v1217, 0.0
    %v1282 = vmax.f32 %v1218, 0.0
    %v1283 = vmax.f32 %v1219, 0.0
    %v1284 = vmax.f32 %v1220, 0.0
    %v1285 = vmax.f32 %v1221, 0.0
    %v1286 = vmax.f32 %v1222, 0.0
    %v1287 = vmax.f32 %v1223, 0.0
    %v1288 = vmax.f32 %v1224, 0.0
    %v1289 = vmax.f32 %v1225, 0.0
    %v1290 = vmax.f32 %v1226, 0.0
    %v1291 = vmax.f32 %v1227, 0.0
    %v1292 = vmax.f32 %v1228, 0.0
    %v1293 = vmax.f32 %v1229, 0.0
    %v1294 = vmax.f32 %v1230, 0.0
    %v1295 = vmax.f32 %v1231, 0.0
    %v1296 = vmax.f32 %v1232, 0.0
    %v1297 = vsel %vm913, 0.0, %v1233
    %v1298 = vsel %vm914, 0.0, %v1234
    %v1299 = vsel %vm915, 0.0, %v1235
    %v1300 = vsel %vm916, 0.0, %v1236
    %v1301 = vsel %vm917, 0.0, %v1237
    %v1302 = vsel %vm918, 0.0, %v1238
    %v1303 = vsel %vm919, 0.0, %v1239
    %v1304 = vsel %vm920, 0.0, %v1240
    %v1305 = vsel %vm921, 0.0, %v1241
    %v1306 = vsel %vm922, 0.0, %v1242
    %v1307 = vsel %vm923, 0.0, %v1243
    %v1308 = vsel %vm924, 0.0, %v1244
    %v1309 = vsel %vm925, 0.0, %v1245
    %v1310 = vsel %vm926, 0.0, %v1246
    %v1311 = vsel %vm927, 0.0, %v1247
    %v1312 = vsel %vm928, 0.0, %v1248
    %v1313 = vsel %vm929, 0.0, %v1249
    %v1314 = vsel %vm930, 0.0, %v1250
    %v1315 = vsel %vm931, 0.0, %v1251
    %v1316 = vsel %vm932, 0.0, %v1252
    %v1317 = vsel %vm933, 0.0, %v1253
    %v1318 = vsel %vm934, 0.0, %v1254
    %v1319 = vsel %vm935, 0.0, %v1255
    %v1320 = vsel %vm936, 0.0, %v1256
    %v1321 = vsel %vm937, 0.0, %v1257
    %v1322 = vsel %vm938, 0.0, %v1258
    %v1323 = vsel %vm939, 0.0, %v1259
    %v1324 = vsel %vm940, 0.0, %v1260
    %v1325 = vsel %vm941, 0.0, %v1261
    %v1326 = vsel %vm942, 0.0, %v1262
    %v1327 = vsel %vm943, 0.0, %v1263
    %v1328 = vsel %vm944, 0.0, %v1264
    %v1329 = vsel %vm945, 0.0, %v1265
    %v1330 = vsel %vm946, 0.0, %v1266
    %v1331 = vsel %vm947, 0.0, %v1267
    %v1332 = vsel %vm948, 0.0, %v1268
    %v1333 = vsel %vm949, 0.0, %v1269
    %v1334 = vsel %vm950, 0.0, %v1270
    %v1335 = vsel %vm951, 0.0, %v1271
    %v1336 = vsel %vm952, 0.0, %v1272
    %v1337 = vsel %vm953, 0.0, %v1273
    %v1338 = vsel %vm954, 0.0, %v1274
    %v1339 = vsel %vm955, 0.0, %v1275
    %v1340 = vsel %vm956, 0.0, %v1276
    %v1341 = vsel %vm957, 0.0, %v1277
    %v1342 = vsel %vm958, 0.0, %v1278
    %v1343 = vsel %vm959, 0.0, %v1279
    %v1344 = vsel %vm960, 0.0, %v1280
    %v1345 = vsel %vm961, 0.0, %v1281
    %v1346 = vsel %vm962, 0.0, %v1282
    %v1347 = vsel %vm963, 0.0, %v1283
    %v1348 = vsel %vm964, 0.0, %v1284
    %v1349 = vsel %vm965, 0.0, %v1285
    %v1350 = vsel %vm966, 0.0, %v1286
    %v1351 = vsel %vm967, 0.0, %v1287
    %v1352 = vsel %vm968, 0.0, %v1288
    %v1353 = vsel %vm969, 0.0, %v1289
    %v1354 = vsel %vm970, 0.0, %v1290
    %v1355 = vsel %vm971, 0.0, %v1291
    %v1356 = vsel %vm972, 0.0, %v1292
    %v1357 = vsel %vm973, 0.0, %v1293
    %v1358 = vsel %vm974, 0.0, %v1294
    %v1359 = vsel %vm975, 0.0, %v1295
    %v1360 = vsel %vm976, 0.0, %v1296
    %v1361 = vmax.f32 %v1105, %v1106
    %1362 = vmax.xlane.f32.xlu0 %v1361
    %v1363 = vpop.xlane.xlu0 %1362
    %v1364 = vmax.f32 %v1107, %v1108
    %1365 = vmax.xlane.f32.xlu0 %v1364
    %v1366 = vpop.xlane.xlu0 %1365
    %v1367 = vmax.f32 %v1109, %v1110
    %1368 = vmax.xlane.f32.xlu0 %v1367
    %v1369 = vpop.xlane.xlu0 %1368
    %v1370 = vmax.f32 %v1111, %v1112
    %1371 = vmax.xlane.f32.xlu0 %v1370
    %v1372 = vpop.xlane.xlu0 %1371
    %v1373 = vmax.f32 %v1113, %v1114
    %1374 = vmax.xlane.f32.xlu0 %v1373
    %v1375 = vpop.xlane.xlu0 %1374
    %v1376 = vmax.f32 %v1115, %v1116
    %1377 = vmax.xlane.f32.xlu0 %v1376
    %v1378 = vpop.xlane.xlu0 %1377
    %v1379 = vmax.f32 %v1117, %v1118
    %1380 = vmax.xlane.f32.xlu0 %v1379
    %v1381 = vpop.xlane.xlu0 %1380
    %v1382 = vmax.f32 %v1119, %v1120
    %1383 = vmax.xlane.f32.xlu0 %v1382
    %v1384 = vpop.xlane.xlu0 %1383
    %v1385 = vmax.f32 %v1121, %v1122
    %1386 = vmax.xlane.f32.xlu0 %v1385
    %v1387 = vpop.xlane.xlu0 %1386
    %v1388 = vmax.f32 %v1123, %v1124
    %1389 = vmax.xlane.f32.xlu0 %v1388
    %v1390 = vpop.xlane.xlu0 %1389
    %v1391 = vmax.f32 %v1125, %v1126
    %1392 = vmax.xlane.f32.xlu0 %v1391
    %v1393 = vpop.xlane.xlu0 %1392
    %v1394 = vmax.f32 %v1127, %v1128
    %1395 = vmax.xlane.f32.xlu0 %v1394
    %v1396 = vpop.xlane.xlu0 %1395
    %v1397 = vmax.f32 %v1129, %v1130
    %1398 = vmax.xlane.f32.xlu0 %v1397
    %v1399 = vpop.xlane.xlu0 %1398
    %v1400 = vmax.f32 %v1131, %v1132
    %1401 = vmax.xlane.f32.xlu0 %v1400
    %v1402 = vpop.xlane.xlu0 %1401
    %v1403 = vmax.f32 %v1133, %v1134
    %1404 = vmax.xlane.f32.xlu0 %v1403
    %v1405 = vpop.xlane.xlu0 %1404
    %v1406 = vmax.f32 %v1135, %v1136
    %1407 = vmax.xlane.f32.xlu0 %v1406
    %v1408 = vpop.xlane.xlu0 %1407
    %v1409 = vmax.f32 %v1137, %v1138
    %1410 = vmax.xlane.f32.xlu0 %v1409
    %v1411 = vpop.xlane.xlu0 %1410
    %v1412 = vmax.f32 %v1139, %v1140
    %1413 = vmax.xlane.f32.xlu0 %v1412
    %v1414 = vpop.xlane.xlu0 %1413
    %v1415 = vmax.f32 %v1141, %v1142
    %1416 = vmax.xlane.f32.xlu0 %v1415
    %v1417 = vpop.xlane.xlu0 %1416
    %v1418 = vmax.f32 %v1143, %v1144
    %1419 = vmax.xlane.f32.xlu0 %v1418
    %v1420 = vpop.xlane.xlu0 %1419
    %v1421 = vmax.f32 %v1145, %v1146
    %1422 = vmax.xlane.f32.xlu0 %v1421
    %v1423 = vpop.xlane.xlu0 %1422
    %v1424 = vmax.f32 %v1147, %v1148
    %1425 = vmax.xlane.f32.xlu0 %v1424
    %v1426 = vpop.xlane.xlu0 %1425
    %v1427 = vmax.f32 %v1149, %v1150
    %1428 = vmax.xlane.f32.xlu0 %v1427
    %v1429 = vpop.xlane.xlu0 %1428
    %v1430 = vmax.f32 %v1151, %v1152
    %1431 = vmax.xlane.f32.xlu0 %v1430
    %v1432 = vpop.xlane.xlu0 %1431
    %v1433 = vmax.f32 %v1153, %v1154
    %1434 = vmax.xlane.f32.xlu0 %v1433
    %v1435 = vpop.xlane.xlu0 %1434
    %v1436 = vmax.f32 %v1155, %v1156
    %1437 = vmax.xlane.f32.xlu0 %v1436
    %v1438 = vpop.xlane.xlu0 %1437
    %v1439 = vmax.f32 %v1157, %v1158
    %1440 = vmax.xlane.f32.xlu0 %v1439
    %v1441 = vpop.xlane.xlu0 %1440
    %v1442 = vmax.f32 %v1159, %v1160
    %1443 = vmax.xlane.f32.xlu0 %v1442
    %v1444 = vpop.xlane.xlu0 %1443
    %v1445 = vmax.f32 %v1161, %v1162
    %1446 = vmax.xlane.f32.xlu0 %v1445
    %v1447 = vpop.xlane.xlu0 %1446
    %v1448 = vmax.f32 %v1163, %v1164
    %1449 = vmax.xlane.f32.xlu0 %v1448
    %v1450 = vpop.xlane.xlu0 %1449
    %v1451 = vmax.f32 %v1165, %v1166
    %1452 = vmax.xlane.f32.xlu0 %v1451
    %v1453 = vpop.xlane.xlu0 %1452
    %v1454 = vmax.f32 %v1167, %v1168
    %1455 = vmax.xlane.f32.xlu0 %v1454
    %v1456 = vpop.xlane.xlu0 %1455
    %vm1457 = vcmask 7168
    %v1458 = vsel %vm1457, %v1363, 0.0
    %v1459 = vsel %vm1457, %v1366, 0.0
    %v1460 = vadd.f32 %v1458, %v1459
    %v1461 = vsel %vm1457, %v1369, 0.0
    %v1462 = vadd.f32 %v1460, %v1461
    %v1463 = vsel %vm1457, %v1372, 0.0
    %v1464 = vadd.f32 %v1462, %v1463
    %v1465 = vsel %vm1457, %v1375, 0.0
    %v1466 = vadd.f32 %v1464, %v1465
    %v1467 = vsel %vm1457, %v1378, 0.0
    %v1468 = vadd.f32 %v1466, %v1467
    %v1469 = vsel %vm1457, %v1381, 0.0
    %v1470 = vadd.f32 %v1468, %v1469
    %v1471 = vsel %vm1457, %v1384, 0.0
    %v1472 = vadd.f32 %v1470, %v1471
    %v1473 = vsel %vm1457, %v1387, 0.0
    %v1474 = vadd.f32 %v1472, %v1473
    %v1475 = vsel %vm1457, %v1390, 0.0
    %v1476 = vadd.f32 %v1474, %v1475
    %v1477 = vsel %vm1457, %v1393, 0.0
    %v1478 = vadd.f32 %v1476, %v1477
    %v1479 = vsel %vm1457, %v1396, 0.0
    %v1480 = vadd.f32 %v1478, %v1479
    %v1481 = vsel %vm1457, %v1399, 0.0
    %v1482 = vadd.f32 %v1480, %v1481
    %v1483 = vsel %vm1457, %v1402, 0.0
    %v1484 = vadd.f32 %v1482, %v1483
    %v1485 = vsel %vm1457, %v1405, 0.0
    %v1486 = vadd.f32 %v1484, %v1485
    %v1487 = vsel %vm1457, %v1408, 0.0
    %v1488 = vadd.f32 %v1486, %v1487
    %v1489 = vsel %vm1457, %v1411, 0.0
    %v1490 = vadd.f32 %v1488, %v1489
    %v1491 = vsel %vm1457, %v1414, 0.0
    %v1492 = vadd.f32 %v1490, %v1491
    %v1493 = vsel %vm1457, %v1417, 0.0
    %v1494 = vadd.f32 %v1492, %v1493
    %v1495 = vsel %vm1457, %v1420, 0.0
    %v1496 = vadd.f32 %v1494, %v1495
    %v1497 = vsel %vm1457, %v1423, 0.0
    %v1498 = vadd.f32 %v1496, %v1497
    %v1499 = vsel %vm1457, %v1426, 0.0
    %v1500 = vadd.f32 %v1498, %v1499
    %v1501 = vsel %vm1457, %v1429, 0.0
    %v1502 = vadd.f32 %v1500, %v1501
    %v1503 = vsel %vm1457, %v1432, 0.0
    %v1504 = vadd.f32 %v1502, %v1503
    %v1505 = vsel %vm1457, %v1435, 0.0
    %v1506 = vadd.f32 %v1504, %v1505
    %v1507 = vsel %vm1457, %v1438, 0.0
    %v1508 = vadd.f32 %v1506, %v1507
    %v1509 = vsel %vm1457, %v1441, 0.0
    %v1510 = vadd.f32 %v1508, %v1509
    %v1511 = vsel %vm1457, %v1444, 0.0
    %v1512 = vadd.f32 %v1510, %v1511
    %v1513 = vsel %vm1457, %v1447, 0.0
    %v1514 = vadd.f32 %v1512, %v1513
    %v1515 = vsel %vm1457, %v1450, 0.0
    %v1516 = vadd.f32 %v1514, %v1515
    %v1517 = vsel %vm1457, %v1453, 0.0
    %v1518 = vadd.f32 %v1516, %v1517
    %v1519 = vsel %vm1457, %v1456, 0.0
    %v1520 = vadd.f32 %v1518, %v1519
    %1521 = vadd.xlane.f32.xlu0 %v1520
    %v1522 = vpop.xlane.xlu0 %1521
    %v1523 = vrot.slane %v1522, 4
    %v1524 = vadd.f32 %v1522, %v1523
    %v1525 = vrot.slane %v1524, 2
    %v1526 = vadd.f32 %v1524, %v1525
    %v1527 = vrot.slane %v1526, 1
    %v1528 = vadd.f32 %v1526, %v1527
    %s1529 = vtos %v1528
    %v1530 = vmax.f32 %v1297, %v1298
    %1531 = vmax.xlane.f32.xlu0 %v1530
    %v1532 = vpop.xlane.xlu0 %1531
    %v1533 = vmax.f32 %v1299, %v1300
    %1534 = vmax.xlane.f32.xlu0 %v1533
    %v1535 = vpop.xlane.xlu0 %1534
    %v1536 = vmax.f32 %v1301, %v1302
    %1537 = vmax.xlane.f32.xlu0 %v1536
    %v1538 = vpop.xlane.xlu0 %1537
    %v1539 = vmax.f32 %v1303, %v1304
    %1540 = vmax.xlane.f32.xlu0 %v1539
    %v1541 = vpop.xlane.xlu0 %1540
    %v1542 = vmax.f32 %v1305, %v1306
    %1543 = vmax.xlane.f32.xlu0 %v1542
    %v1544 = vpop.xlane.xlu0 %1543
    %v1545 = vmax.f32 %v1307, %v1308
    %1546 = vmax.xlane.f32.xlu0 %v1545
    %v1547 = vpop.xlane.xlu0 %1546
    %v1548 = vmax.f32 %v1309, %v1310
    %1549 = vmax.xlane.f32.xlu0 %v1548
    %v1550 = vpop.xlane.xlu0 %1549
    %v1551 = vmax.f32 %v1311, %v1312
    %1552 = vmax.xlane.f32.xlu0 %v1551
    %v1553 = vpop.xlane.xlu0 %1552
    %v1554 = vmax.f32 %v1313, %v1314
    %1555 = vmax.xlane.f32.xlu0 %v1554
    %v1556 = vpop.xlane.xlu0 %1555
    %v1557 = vmax.f32 %v1315, %v1316
    %1558 = vmax.xlane.f32.xlu0 %v1557
    %v1559 = vpop.xlane.xlu0 %1558
    %v1560 = vmax.f32 %v1317, %v1318
    %1561 = vmax.xlane.f32.xlu0 %v1560
    %v1562 = vpop.xlane.xlu0 %1561
    %v1563 = vmax.f32 %v1319, %v1320
    %1564 = vmax.xlane.f32.xlu0 %v1563
    %v1565 = vpop.xlane.xlu0 %1564
    %v1566 = vmax.f32 %v1321, %v1322
    %1567 = vmax.xlane.f32.xlu0 %v1566
    %v1568 = vpop.xlane.xlu0 %1567
    %v1569 = vmax.f32 %v1323, %v1324
    %1570 = vmax.xlane.f32.xlu0 %v1569
    %v1571 = vpop.xlane.xlu0 %1570
    %v1572 = vmax.f32 %v1325, %v1326
    %1573 = vmax.xlane.f32.xlu0 %v1572
    %v1574 = vpop.xlane.xlu0 %1573
    %v1575 = vmax.f32 %v1327, %v1328
    %1576 = vmax.xlane.f32.xlu0 %v1575
    %v1577 = vpop.xlane.xlu0 %1576
    %v1578 = vmax.f32 %v1329, %v1330
    %1579 = vmax.xlane.f32.xlu0 %v1578
    %v1580 = vpop.xlane.xlu0 %1579
    %v1581 = vmax.f32 %v1331, %v1332
    %1582 = vmax.xlane.f32.xlu0 %v1581
    %v1583 = vpop.xlane.xlu0 %1582
    %v1584 = vmax.f32 %v1333, %v1334
    %1585 = vmax.xlane.f32.xlu0 %v1584
    %v1586 = vpop.xlane.xlu0 %1585
    %v1587 = vmax.f32 %v1335, %v1336
    %1588 = vmax.xlane.f32.xlu0 %v1587
    %v1589 = vpop.xlane.xlu0 %1588
    %v1590 = vmax.f32 %v1337, %v1338
    %1591 = vmax.xlane.f32.xlu0 %v1590
    %v1592 = vpop.xlane.xlu0 %1591
    %v1593 = vmax.f32 %v1339, %v1340
    %1594 = vmax.xlane.f32.xlu0 %v1593
    %v1595 = vpop.xlane.xlu0 %1594
    %v1596 = vmax.f32 %v1341, %v1342
    %1597 = vmax.xlane.f32.xlu0 %v1596
    %v1598 = vpop.xlane.xlu0 %1597
    %v1599 = vmax.f32 %v1343, %v1344
    %1600 = vmax.xlane.f32.xlu0 %v1599
    %v1601 = vpop.xlane.xlu0 %1600
    %v1602 = vmax.f32 %v1345, %v1346
    %1603 = vmax.xlane.f32.xlu0 %v1602
    %v1604 = vpop.xlane.xlu0 %1603
    %v1605 = vmax.f32 %v1347, %v1348
    %1606 = vmax.xlane.f32.xlu0 %v1605
    %v1607 = vpop.xlane.xlu0 %1606
    %v1608 = vmax.f32 %v1349, %v1350
    %1609 = vmax.xlane.f32.xlu0 %v1608
    %v1610 = vpop.xlane.xlu0 %1609
    %v1611 = vmax.f32 %v1351, %v1352
    %1612 = vmax.xlane.f32.xlu0 %v1611
    %v1613 = vpop.xlane.xlu0 %1612
    %v1614 = vmax.f32 %v1353, %v1354
    %1615 = vmax.xlane.f32.xlu0 %v1614
    %v1616 = vpop.xlane.xlu0 %1615
    %v1617 = vmax.f32 %v1355, %v1356
    %1618 = vmax.xlane.f32.xlu0 %v1617
    %v1619 = vpop.xlane.xlu0 %1618
    %v1620 = vmax.f32 %v1357, %v1358
    %1621 = vmax.xlane.f32.xlu0 %v1620
    %v1622 = vpop.xlane.xlu0 %1621
    %v1623 = vmax.f32 %v1359, %v1360
    %1624 = vmax.xlane.f32.xlu0 %v1623
    %v1625 = vpop.xlane.xlu0 %1624
    %v1626 = vsel %vm1457, %v1532, 0.0
    %v1627 = vsel %vm1457, %v1535, 0.0
    %v1628 = vadd.f32 %v1626, %v1627
    %v1629 = vsel %vm1457, %v1538, 0.0
    %v1630 = vadd.f32 %v1628, %v1629
    %v1631 = vsel %vm1457, %v1541, 0.0
    %v1632 = vadd.f32 %v1630, %v1631
    %v1633 = vsel %vm1457, %v1544, 0.0
    %v1634 = vadd.f32 %v1632, %v1633
    %v1635 = vsel %vm1457, %v1547, 0.0
    %v1636 = vadd.f32 %v1634, %v1635
    %v1637 = vsel %vm1457, %v1550, 0.0
    %v1638 = vadd.f32 %v1636, %v1637
    %v1639 = vsel %vm1457, %v1553, 0.0
    %v1640 = vadd.f32 %v1638, %v1639
    %v1641 = vsel %vm1457, %v1556, 0.0
    %v1642 = vadd.f32 %v1640, %v1641
    %v1643 = vsel %vm1457, %v1559, 0.0
    %v1644 = vadd.f32 %v1642, %v1643
    %v1645 = vsel %vm1457, %v1562, 0.0
    %v1646 = vadd.f32 %v1644, %v1645
    %v1647 = vsel %vm1457, %v1565, 0.0
    %v1648 = vadd.f32 %v1646, %v1647
    %v1649 = vsel %vm1457, %v1568, 0.0
    %v1650 = vadd.f32 %v1648, %v1649
    %v1651 = vsel %vm1457, %v1571, 0.0
    %v1652 = vadd.f32 %v1650, %v1651
    %v1653 = vsel %vm1457, %v1574, 0.0
    %v1654 = vadd.f32 %v1652, %v1653
    %v1655 = vsel %vm1457, %v1577, 0.0
    %v1656 = vadd.f32 %v1654, %v1655
    %v1657 = vsel %vm1457, %v1580, 0.0
    %v1658 = vadd.f32 %v1656, %v1657
    %v1659 = vsel %vm1457, %v1583, 0.0
    %v1660 = vadd.f32 %v1658, %v1659
    %v1661 = vsel %vm1457, %v1586, 0.0
    %v1662 = vadd.f32 %v1660, %v1661
    %v1663 = vsel %vm1457, %v1589, 0.0
    %v1664 = vadd.f32 %v1662, %v1663
    %v1665 = vsel %vm1457, %v1592, 0.0
    %v1666 = vadd.f32 %v1664, %v1665
    %v1667 = vsel %vm1457, %v1595, 0.0
    %v1668 = vadd.f32 %v1666, %v1667
    %v1669 = vsel %vm1457, %v1598, 0.0
    %v1670 = vadd.f32 %v1668, %v1669
    %v1671 = vsel %vm1457, %v1601, 0.0
    %v1672 = vadd.f32 %v1670, %v1671
    %v1673 = vsel %vm1457, %v1604, 0.0
    %v1674 = vadd.f32 %v1672, %v1673
    %v1675 = vsel %vm1457, %v1607, 0.0
    %v1676 = vadd.f32 %v1674, %v1675
    %v1677 = vsel %vm1457, %v1610, 0.0
    %v1678 = vadd.f32 %v1676, %v1677
    %v1679 = vsel %vm1457, %v1613, 0.0
    %v1680 = vadd.f32 %v1678, %v1679
    %v1681 = vsel %vm1457, %v1616, 0.0
    %v1682 = vadd.f32 %v1680, %v1681
    %v1683 = vsel %vm1457, %v1619, 0.0
    %v1684 = vadd.f32 %v1682, %v1683
    %v1685 = vsel %vm1457, %v1622, 0.0
    %v1686 = vadd.f32 %v1684, %v1685
    %v1687 = vsel %vm1457, %v1625, 0.0
    %v1688 = vadd.f32 %v1686, %v1687
    %1689 = vadd.xlane.f32.xlu0 %v1688
    %v1690 = vpop.xlane.xlu0 %1689
    %v1691 = vrot.slane %v1690, 4
    %v1692 = vadd.f32 %v1690, %v1691
    %v1693 = vrot.slane %v1692, 2
    %v1694 = vadd.f32 %v1692, %v1693
    %v1695 = vrot.slane %v1694, 1
    %v1696 = vadd.f32 %v1694, %v1695
    %s1697 = vtos %v1696
    %s1698 = sadd.f32 %s1529, %s1697
    %p1699 = scmp.eq.s32.totalorder 0, 0
    // Predicated region
    $region34: #{tpu_custom_call.1} parent=1 // pred_check
      %p1700 = pneg %p1699
    $region35: #{tpu_custom_call.1} parent=1 // pred_check_branch
      %1702 = sbr.rel (%p1700) target = $region37
    $region36: #{tpu_custom_call.1} parent=1 // pred_region
      %s1703 = scalar_lea.smem [#allocation10], 0
      %1704 = sst [smem:[%s1703]] 0.0
    $region37: #{tpu_custom_call.1} parent=1 // pred_fallthru
      _
    %s1705 = sld [smem:[#allocation10]]
    %s1706 = sadd.f32 %s1705, %s1698
    %s1707 = scalar_lea.smem [#allocation10], 0
    %1708 = sst [smem:[%s1707]] %s1706
    // Predicated region
    $region38: #{tpu_custom_call.1} parent=1 // pred_check
      _
    $region39: #{tpu_custom_call.1} parent=1 // pred_check_branch
      %1710 = sbr.rel (0) target = $region41
    $region40: #{tpu_custom_call.1} parent=1 // pred_region
      %s1712 = ssub.s32 16, 16
      %1713 = vsyncadd [#allocation4], %s1712
      %1716 = dma.smem_to_hbm [#allocation10], 16, %s4, [#allocation4]
    $region41: #{tpu_custom_call.1} parent=1 // pred_fallthru
      _
    // Predicated region
    $region42: #{tpu_custom_call.1} parent=1 // pred_check
      _
    $region43: #{tpu_custom_call.1} parent=1 // pred_check_branch
      %1718 = sbr.rel (0) target = $region45
    $region44: #{tpu_custom_call.1} parent=1 // pred_region
      %1719 = dma.done [#allocation4], 16
    $region45: #{tpu_custom_call.1} parent=1 // pred_fallthru
      _
    %1720 = sfence
    %1721 = vsyncpa [#allocation3], 1
    %1722 = vsyncpa [#allocation6], 1
    %1723 = vsyncpa [#allocation9], 1
    %1724 = vsyncpa [#allocation4], 1

</llo_original>
